<compile_context>
chip_gen: v5e
topology: v5e:2x2
jax: 0.10.0
libtpu: 0.0.40
codegen_flags: <defaults>
</compile_context>

<pallas_src>
import functools

import jax
import jax.numpy as jnp
from jax.experimental import pallas as pl
from jax.experimental.pallas import tpu as pltpu

LN_EPS = 1e-5  # PyTorch nn.LayerNorm default


def simba_kernel(num_blocks, hidden_true,
                 x_ref, win_ref, bin_ref,
                 lng_ref, lnb_ref, w1_ref, b1_ref, w2_ref, b2_ref,
                 lnfg_ref, lnfb_ref, wout_ref, bout_ref,
                 out_ref):
    f32 = jnp.float32
    bf16 = jnp.bfloat16
    hp = lng_ref.shape[-1]              # padded hidden width (lane-aligned)
    inv_h = 1.0 / float(hidden_true)    # static reciprocal of the true width

    # Lane mask for LayerNorm statistics over the padded hidden dim.
    # Built once (hoisted) — JAX does not CSE broadcasts.
    if hp == hidden_true:
        mask = None
    else:
        lane = jax.lax.broadcasted_iota(jnp.int32, (1, hp), 1)
        mask = (lane < hidden_true).astype(f32)

    def layernorm(h, gamma, beta):
        # Padded lanes of h are identically zero, so the plain sum is exact.
        mean = jnp.sum(h, axis=-1, keepdims=True) * inv_h
        d = h - mean
        if mask is not None:
            d = d * mask                # keep padded lanes out of the variance
        var = jnp.sum(d * d, axis=-1, keepdims=True) * inv_h
        # gamma/beta are zero in the padded region -> output padded lanes == 0.
        return d * jax.lax.rsqrt(var + LN_EPS) * gamma + beta

    def block(h, gamma, beta, w1, b1, w2, b2):
        y = layernorm(h, gamma, beta)                                   # f32
        y = jnp.dot(y.astype(bf16), w1, preferred_element_type=f32) + b1
        y = jnp.maximum(y, 0.0)                                         # ReLU
        y = jnp.dot(y.astype(bf16), w2, preferred_element_type=f32) + b2
        return h + y                                                    # f32 residual

    # Input projection: (TB, Dinp)bf16 @ (Dinp, Hp)bf16 -> f32, + bias.
    h = jnp.dot(x_ref[...], win_ref[...], preferred_element_type=f32) + bin_ref[...]

    if num_blocks <= 4:
        # Small depth: static unroll (static ref slices).
        for i in range(num_blocks):
            h = block(h, lng_ref[i], lnb_ref[i],
                      w1_ref[i], b1_ref[i], w2_ref[i], b2_ref[i])
    else:
        # Deep stacks: bounded-body loop with dynamic leading-axis indexing.
        def body(i, hc):
            return block(hc, lng_ref[i], lnb_ref[i],
                         w1_ref[i], b1_ref[i], w2_ref[i], b2_ref[i])
        h = jax.lax.fori_loop(0, num_blocks, body, h)

    # Final LayerNorm + output projection (lane-dense output store).
    h = layernorm(h, lnfg_ref[...], lnfb_ref[...])
    out = jnp.dot(h.astype(bf16), wout_ref[...], preferred_element_type=f32) + bout_ref[...]
    out_ref[...] = out.astype(out_ref.dtype)


def _round_up(n, m):
    return (n + m - 1) // m * m


def _pad_to(a, shape):
    return jnp.pad(a, [(0, t - s) for s, t in zip(a.shape, shape)])


def _const_index_map(nd):
    return lambda i: (0,) * nd


def simba_forward(x, params, num_blocks, *, tile_b=None):
    f32, bf16 = jnp.float32, jnp.bfloat16
    B, Din = x.shape
    H = params["w_in"].shape[1]
    H4 = params["w1"].shape[2]
    Dout = params["w_out"].shape[1]
    nb = num_blocks
    LANE = 128

    # Lane-pad every feature dimension to a multiple of 128.
    Dinp = _round_up(Din, LANE)
    Hp = _round_up(H, LANE)
    H4p = _round_up(H4, LANE)
    Doutp = _round_up(Dout, LANE)

    # Batch tiling: whole (8-padded) batch in one step when small; 128-row
    # MXU-filling tiles (>= 2 parallel grid steps -> v7x megacore) when large.
    Bp = _round_up(B, 8)
    if tile_b is None:
        tile_b = min(128, Bp)
    assert tile_b % 8 == 0
    Bp = _round_up(Bp, tile_b)

    # Pad + cast.  Matmul operands in bf16, biases / LN params in f32.
    xp    = _pad_to(x, (Bp, Dinp)).astype(bf16)
    w_in  = _pad_to(params["w_in"],  (Dinp, Hp)).astype(bf16)
    b_in  = _pad_to(params["b_in"],  (1, Hp)).astype(f32)
    ln_g  = _pad_to(params["ln_g"],  (nb, 1, Hp)).astype(f32)
    ln_b  = _pad_to(params["ln_b"],  (nb, 1, Hp)).astype(f32)
    w1    = _pad_to(params["w1"],    (nb, Hp, H4p)).astype(bf16)
    b1    = _pad_to(params["b1"],    (nb, 1, H4p)).astype(f32)
    w2    = _pad_to(params["w2"],    (nb, H4p, Hp)).astype(bf16)
    b2    = _pad_to(params["b2"],    (nb, 1, Hp)).astype(f32)
    lnf_g = _pad_to(params["lnf_g"], (1, Hp)).astype(f32)
    lnf_b = _pad_to(params["lnf_b"], (1, Hp)).astype(f32)
    w_out = _pad_to(params["w_out"], (Hp, Doutp)).astype(bf16)
    b_out = _pad_to(params["b_out"], (1, Doutp)).astype(f32)

    operands = (xp, w_in, b_in, ln_g, ln_b, w1, b1, w2, b2,
                lnf_g, lnf_b, w_out, b_out)

    kernel = functools.partial(simba_kernel, num_blocks, H)

    def build_and_run(single_buffer_weights):
        def resident(arr):
            idx = _const_index_map(arr.ndim)
            if single_buffer_weights:
                # Grid-invariant operand: one VMEM buffer instead of two.
                return pl.BlockSpec(arr.shape, idx, pipeline_mode=pl.Buffered(1))
            return pl.BlockSpec(arr.shape, idx)

        in_specs = [pl.BlockSpec((tile_b, Dinp), lambda i: (i, 0))]
        in_specs += [resident(a) for a in operands[1:]]
        out_spec = pl.BlockSpec((tile_b, Doutp), lambda i: (i, 0))

        return pl.pallas_call(
            kernel,
            out_shape=jax.ShapeDtypeStruct((Bp, Doutp), jnp.float32),
            grid_spec=pltpu.PrefetchScalarGridSpec(
                num_scalar_prefetch=0,
                grid=(Bp // tile_b,),
                in_specs=in_specs,
                out_specs=out_spec,
            ),
            compiler_params=pltpu.CompilerParams(
                dimension_semantics=("parallel",),
                vmem_limit_bytes=64 * 1024 * 1024,
            ),
        )(*operands)

    try:
        out = build_and_run(True)
    except Exception:
        # pipeline_mode=pl.Buffered(1) unsupported on this jax build — fall
        # back to default double-buffering of the resident operands.
        out = build_and_run(False)

    return out[:B, :Dout]


def simba_reference(x, params, num_blocks):
    """Pure-JAX reference mirroring the kernel's bf16-operand / f32-accum math."""
    f32, bf16 = jnp.float32, jnp.bfloat16

    def dot16(a, w):
        return jnp.dot(a.astype(bf16), w.astype(bf16), preferred_element_type=f32)

    def ln(h, g, b):
        mean = jnp.mean(h, axis=-1, keepdims=True)
        var = jnp.mean((h - mean) ** 2, axis=-1, keepdims=True)
        return (h - mean) * jax.lax.rsqrt(var + LN_EPS) * g + b

    h = dot16(x, params["w_in"]) + params["b_in"]
    for i in range(num_blocks):
        y = ln(h, params["ln_g"][i], params["ln_b"][i])
        y = jnp.maximum(dot16(y, params["w1"][i]) + params["b1"][i], 0.0)
        y = dot16(y, params["w2"][i]) + params["b2"][i]
        h = h + y
    h = ln(h, params["lnf_g"], params["lnf_b"])
    return dot16(h, params["w_out"]) + params["b_out"]


def init_params(key, input_dim, hidden_dim, output_dim, num_blocks):
    """Deterministic synthetic init (uniform, roughly PyTorch Linear scale)."""
    H4 = hidden_dim * 4
    keys = jax.random.split(key, 8)

    def lin(k, fan_in, shape):
        bound = 1.0 / jnp.sqrt(fan_in)
        return jax.random.uniform(k, shape, jnp.float32, -bound, bound)

    return {
        "w_in":  lin(keys[0], input_dim, (input_dim, hidden_dim)),
        "b_in":  lin(keys[1], input_dim, (1, hidden_dim)),
        "ln_g":  jnp.ones((num_blocks, 1, hidden_dim), jnp.float32),
        "ln_b":  jnp.zeros((num_blocks, 1, hidden_dim), jnp.float32),
        "w1":    lin(keys[2], hidden_dim, (num_blocks, hidden_dim, H4)),
        "b1":    lin(keys[3], hidden_dim, (num_blocks, 1, H4)),
        "w2":    lin(keys[4], H4, (num_blocks, H4, hidden_dim)),
        "b2":    lin(keys[5], H4, (num_blocks, 1, hidden_dim)),
        "lnf_g": jnp.ones((1, hidden_dim), jnp.float32),
        "lnf_b": jnp.zeros((1, hidden_dim), jnp.float32),
        "w_out": lin(keys[6], hidden_dim, (hidden_dim, output_dim)),
        "b_out": lin(keys[7], hidden_dim, (1, output_dim)),
    }


if __name__ == "__main__":
    B, INPUT_DIM, HIDDEN_DIM, OUTPUT_DIM, NUM_BLOCKS = 16, 24, 32, 16, 2

    key = jax.random.PRNGKey(0)
    kx, kp = jax.random.split(key)
    x = jax.random.normal(kx, (B, INPUT_DIM), jnp.float32)
    params = init_params(kp, INPUT_DIM, HIDDEN_DIM, OUTPUT_DIM, NUM_BLOCKS)

    out = simba_forward(x, params, NUM_BLOCKS)
    out = jax.block_until_ready(out)

    ref = simba_reference(x, params, NUM_BLOCKS)
    assert out.shape == (B, OUTPUT_DIM)
    assert jnp.allclose(out, ref, atol=2e-3, rtol=2e-3), "mismatch vs reference"

    print("KERNEL_OK")
</pallas_src>

<mosaic_0001>
module attributes {stable_mosaic.version = 11 : i64} {
  func.func @simba_kernel(%arg0: i32, %arg1: memref<16x128xbf16, #tpu.memory_space<vmem>>, %arg2: memref<128x128xbf16, #tpu.memory_space<vmem>>, %arg3: memref<1x128xf32, #tpu.memory_space<vmem>>, %arg4: memref<2x1x128xf32, #tpu.memory_space<vmem>>, %arg5: memref<2x1x128xf32, #tpu.memory_space<vmem>>, %arg6: memref<2x128x128xbf16, #tpu.memory_space<vmem>>, %arg7: memref<2x1x128xf32, #tpu.memory_space<vmem>>, %arg8: memref<2x128x128xbf16, #tpu.memory_space<vmem>>, %arg9: memref<2x1x128xf32, #tpu.memory_space<vmem>>, %arg10: memref<1x128xf32, #tpu.memory_space<vmem>>, %arg11: memref<1x128xf32, #tpu.memory_space<vmem>>, %arg12: memref<128x128xbf16, #tpu.memory_space<vmem>>, %arg13: memref<1x128xf32, #tpu.memory_space<vmem>>, %arg14: memref<16x128xf32, #tpu.memory_space<vmem>>) attributes {dimension_semantics = [#tpu.dimension_semantics<parallel>], iteration_bounds = array<i64: 1>, scalar_prefetch = 0 : i64, scratch_operands = 0 : i64, tpu.core_type = #tpu.core_type<tc>, window_params = [{transform_indices = @transform_0, window_bounds = array<i64: 16, 128>}, {pipeline_mode = #tpu.pipeline_mode<synchronous>, transform_indices = @transform_1, window_bounds = array<i64: 128, 128>}, {pipeline_mode = #tpu.pipeline_mode<synchronous>, transform_indices = @transform_2, window_bounds = array<i64: 1, 128>}, {pipeline_mode = #tpu.pipeline_mode<synchronous>, transform_indices = @transform_3, window_bounds = array<i64: 2, 1, 128>}, {pipeline_mode = #tpu.pipeline_mode<synchronous>, transform_indices = @transform_4, window_bounds = array<i64: 2, 1, 128>}, {pipeline_mode = #tpu.pipeline_mode<synchronous>, transform_indices = @transform_5, window_bounds = array<i64: 2, 128, 128>}, {pipeline_mode = #tpu.pipeline_mode<synchronous>, transform_indices = @transform_6, window_bounds = array<i64: 2, 1, 128>}, {pipeline_mode = #tpu.pipeline_mode<synchronous>, transform_indices = @transform_7, window_bounds = array<i64: 2, 128, 128>}, {pipeline_mode = #tpu.pipeline_mode<synchronous>, transform_indices = @transform_8, window_bounds = array<i64: 2, 1, 128>}, {pipeline_mode = #tpu.pipeline_mode<synchronous>, transform_indices = @transform_9, window_bounds = array<i64: 1, 128>}, {pipeline_mode = #tpu.pipeline_mode<synchronous>, transform_indices = @transform_10, window_bounds = array<i64: 1, 128>}, {pipeline_mode = #tpu.pipeline_mode<synchronous>, transform_indices = @transform_11, window_bounds = array<i64: 128, 128>}, {pipeline_mode = #tpu.pipeline_mode<synchronous>, transform_indices = @transform_12, window_bounds = array<i64: 1, 128>}, {transform_indices = @transform_13, window_bounds = array<i64: 16, 128>}]} {
    %0 = tpu.iota {dimensions = array<i32: 1>} : vector<1x128xi32>
    %c32_i32 = arith.constant 32 : i32
    %1 = vector.broadcast %c32_i32 : i32 to vector<1x128xi32>
    %2 = arith.cmpi slt, %0, %1 : vector<1x128xi32>
    %3 = arith.extui %2 : vector<1x128xi1> to vector<1x128xi32>
    %4 = arith.sitofp %3 : vector<1x128xi32> to vector<1x128xf32>
    %c0 = arith.constant 0 : index
    %c0_0 = arith.constant 0 : index
    %5 = vector.load %arg1[%c0, %c0_0] : memref<16x128xbf16, #tpu.memory_space<vmem>>, vector<16x128xbf16>
    %c0_1 = arith.constant 0 : index
    %c0_2 = arith.constant 0 : index
    %6 = vector.load %arg2[%c0_1, %c0_2] : memref<128x128xbf16, #tpu.memory_space<vmem>>, vector<128x128xbf16>
    %cst = arith.constant dense<0.000000e+00> : vector<16x128xf32>
    %7 = tpu.matmul %5, %6, %cst {dimension_numbers = #tpu.dot_dimension_numbers<[1], [0], [0], [1], [0, 0, 1, 1], [], []>} : vector<16x128xbf16>, vector<128x128xbf16>, vector<16x128xf32> -> vector<16x128xf32>
    %c0_3 = arith.constant 0 : index
    %c0_4 = arith.constant 0 : index
    %8 = vector.load %arg3[%c0_3, %c0_4] : memref<1x128xf32, #tpu.memory_space<vmem>>, vector<1x128xf32>
    %9 = vector.broadcast %8 : vector<1x128xf32> to vector<16x128xf32>
    %10 = arith.addf %7, %9 : vector<16x128xf32>
    %c0_5 = arith.constant 0 : index
    %c0_6 = arith.constant 0 : index
    %c0_7 = arith.constant 0 : index
    %11 = vector.load %arg4[%c0_5, %c0_6, %c0_7] : memref<2x1x128xf32, #tpu.memory_space<vmem>>, vector<1x1x128xf32>
    %12 = vector.shape_cast %11 : vector<1x1x128xf32> to vector<1x128xf32>
    %c0_8 = arith.constant 0 : index
    %c0_9 = arith.constant 0 : index
    %c0_10 = arith.constant 0 : index
    %13 = vector.load %arg5[%c0_8, %c0_9, %c0_10] : memref<2x1x128xf32, #tpu.memory_space<vmem>>, vector<1x1x128xf32>
    %14 = vector.shape_cast %13 : vector<1x1x128xf32> to vector<1x128xf32>
    %c0_11 = arith.constant 0 : index
    %c0_12 = arith.constant 0 : index
    %c0_13 = arith.constant 0 : index
    %15 = vector.load %arg6[%c0_11, %c0_12, %c0_13] : memref<2x128x128xbf16, #tpu.memory_space<vmem>>, vector<1x128x128xbf16>
    %16 = vector.shape_cast %15 : vector<1x128x128xbf16> to vector<128x128xbf16>
    %c0_14 = arith.constant 0 : index
    %c0_15 = arith.constant 0 : index
    %c0_16 = arith.constant 0 : index
    %17 = vector.load %arg7[%c0_14, %c0_15, %c0_16] : memref<2x1x128xf32, #tpu.memory_space<vmem>>, vector<1x1x128xf32>
    %18 = vector.shape_cast %17 : vector<1x1x128xf32> to vector<1x128xf32>
    %c0_17 = arith.constant 0 : index
    %c0_18 = arith.constant 0 : index
    %c0_19 = arith.constant 0 : index
    %19 = vector.load %arg8[%c0_17, %c0_18, %c0_19] : memref<2x128x128xbf16, #tpu.memory_space<vmem>>, vector<1x128x128xbf16>
    %20 = vector.shape_cast %19 : vector<1x128x128xbf16> to vector<128x128xbf16>
    %c0_20 = arith.constant 0 : index
    %c0_21 = arith.constant 0 : index
    %c0_22 = arith.constant 0 : index
    %21 = vector.load %arg9[%c0_20, %c0_21, %c0_22] : memref<2x1x128xf32, #tpu.memory_space<vmem>>, vector<1x1x128xf32>
    %22 = vector.shape_cast %21 : vector<1x1x128xf32> to vector<1x128xf32>
    %cst_23 = arith.constant dense<0.000000e+00> : vector<16xf32>
    %23 = vector.multi_reduction <add>, %10, %cst_23 [1] : vector<16x128xf32> to vector<16xf32>
    %24 = vector.shape_cast %23 : vector<16xf32> to vector<16x1xf32>
    %cst_24 = arith.constant 3.125000e-02 : f32
    %25 = vector.broadcast %cst_24 : f32 to vector<16x1xf32>
    %26 = arith.mulf %24, %25 : vector<16x1xf32>
    %27 = vector.broadcast %26 : vector<16x1xf32> to vector<16x128xf32>
    %28 = arith.subf %10, %27 : vector<16x128xf32>
    %29 = vector.broadcast %4 : vector<1x128xf32> to vector<16x128xf32>
    %30 = arith.mulf %28, %29 : vector<16x128xf32>
    %31 = arith.mulf %30, %30 : vector<16x128xf32>
    %cst_25 = arith.constant dense<0.000000e+00> : vector<16xf32>
    %32 = vector.multi_reduction <add>, %31, %cst_25 [1] : vector<16x128xf32> to vector<16xf32>
    %33 = vector.shape_cast %32 : vector<16xf32> to vector<16x1xf32>
    %cst_26 = arith.constant 3.125000e-02 : f32
    %34 = vector.broadcast %cst_26 : f32 to vector<16x1xf32>
    %35 = arith.mulf %33, %34 : vector<16x1xf32>
    %cst_27 = arith.constant 9.99999974E-6 : f32
    %36 = vector.broadcast %cst_27 : f32 to vector<16x1xf32>
    %37 = arith.addf %35, %36 : vector<16x1xf32>
    %38 = math.rsqrt %37 : vector<16x1xf32>
    %39 = vector.broadcast %38 : vector<16x1xf32> to vector<16x128xf32>
    %40 = arith.mulf %30, %39 : vector<16x128xf32>
    %41 = vector.broadcast %12 : vector<1x128xf32> to vector<16x128xf32>
    %42 = arith.mulf %40, %41 : vector<16x128xf32>
    %43 = vector.broadcast %14 : vector<1x128xf32> to vector<16x128xf32>
    %44 = arith.addf %42, %43 : vector<16x128xf32>
    %45 = arith.truncf %44 : vector<16x128xf32> to vector<16x128xbf16>
    %cst_28 = arith.constant dense<0.000000e+00> : vector<16x128xf32>
    %46 = tpu.matmul %45, %16, %cst_28 {dimension_numbers = #tpu.dot_dimension_numbers<[1], [0], [0], [1], [0, 0, 1, 1], [], []>} : vector<16x128xbf16>, vector<128x128xbf16>, vector<16x128xf32> -> vector<16x128xf32>
    %47 = vector.broadcast %18 : vector<1x128xf32> to vector<16x128xf32>
    %48 = arith.addf %46, %47 : vector<16x128xf32>
    %cst_29 = arith.constant 0.000000e+00 : f32
    %49 = vector.broadcast %cst_29 : f32 to vector<16x128xf32>
    %50 = arith.maximumf %48, %49 : vector<16x128xf32>
    %51 = arith.truncf %50 : vector<16x128xf32> to vector<16x128xbf16>
    %cst_30 = arith.constant dense<0.000000e+00> : vector<16x128xf32>
    %52 = tpu.matmul %51, %20, %cst_30 {dimension_numbers = #tpu.dot_dimension_numbers<[1], [0], [0], [1], [0, 0, 1, 1], [], []>} : vector<16x128xbf16>, vector<128x128xbf16>, vector<16x128xf32> -> vector<16x128xf32>
    %53 = vector.broadcast %22 : vector<1x128xf32> to vector<16x128xf32>
    %54 = arith.addf %52, %53 : vector<16x128xf32>
    %55 = arith.addf %10, %54 : vector<16x128xf32>
    %c1 = arith.constant 1 : index
    %c0_31 = arith.constant 0 : index
    %c0_32 = arith.constant 0 : index
    %56 = vector.load %arg4[%c1, %c0_31, %c0_32] : memref<2x1x128xf32, #tpu.memory_space<vmem>>, vector<1x1x128xf32>
    %57 = vector.shape_cast %56 : vector<1x1x128xf32> to vector<1x128xf32>
    %c1_33 = arith.constant 1 : index
    %c0_34 = arith.constant 0 : index
    %c0_35 = arith.constant 0 : index
    %58 = vector.load %arg5[%c1_33, %c0_34, %c0_35] : memref<2x1x128xf32, #tpu.memory_space<vmem>>, vector<1x1x128xf32>
    %59 = vector.shape_cast %58 : vector<1x1x128xf32> to vector<1x128xf32>
    %c1_36 = arith.constant 1 : index
    %c0_37 = arith.constant 0 : index
    %c0_38 = arith.constant 0 : index
    %60 = vector.load %arg6[%c1_36, %c0_37, %c0_38] : memref<2x128x128xbf16, #tpu.memory_space<vmem>>, vector<1x128x128xbf16>
    %61 = vector.shape_cast %60 : vector<1x128x128xbf16> to vector<128x128xbf16>
    %c1_39 = arith.constant 1 : index
    %c0_40 = arith.constant 0 : index
    %c0_41 = arith.constant 0 : index
    %62 = vector.load %arg7[%c1_39, %c0_40, %c0_41] : memref<2x1x128xf32, #tpu.memory_space<vmem>>, vector<1x1x128xf32>
    %63 = vector.shape_cast %62 : vector<1x1x128xf32> to vector<1x128xf32>
    %c1_42 = arith.constant 1 : index
    %c0_43 = arith.constant 0 : index
    %c0_44 = arith.constant 0 : index
    %64 = vector.load %arg8[%c1_42, %c0_43, %c0_44] : memref<2x128x128xbf16, #tpu.memory_space<vmem>>, vector<1x128x128xbf16>
    %65 = vector.shape_cast %64 : vector<1x128x128xbf16> to vector<128x128xbf16>
    %c1_45 = arith.constant 1 : index
    %c0_46 = arith.constant 0 : index
    %c0_47 = arith.constant 0 : index
    %66 = vector.load %arg9[%c1_45, %c0_46, %c0_47] : memref<2x1x128xf32, #tpu.memory_space<vmem>>, vector<1x1x128xf32>
    %67 = vector.shape_cast %66 : vector<1x1x128xf32> to vector<1x128xf32>
    %cst_48 = arith.constant dense<0.000000e+00> : vector<16xf32>
    %68 = vector.multi_reduction <add>, %55, %cst_48 [1] : vector<16x128xf32> to vector<16xf32>
    %69 = vector.shape_cast %68 : vector<16xf32> to vector<16x1xf32>
    %cst_49 = arith.constant 3.125000e-02 : f32
    %70 = vector.broadcast %cst_49 : f32 to vector<16x1xf32>
    %71 = arith.mulf %69, %70 : vector<16x1xf32>
    %72 = vector.broadcast %71 : vector<16x1xf32> to vector<16x128xf32>
    %73 = arith.subf %55, %72 : vector<16x128xf32>
    %74 = vector.broadcast %4 : vector<1x128xf32> to vector<16x128xf32>
    %75 = arith.mulf %73, %74 : vector<16x128xf32>
    %76 = arith.mulf %75, %75 : vector<16x128xf32>
    %cst_50 = arith.constant dense<0.000000e+00> : vector<16xf32>
    %77 = vector.multi_reduction <add>, %76, %cst_50 [1] : vector<16x128xf32> to vector<16xf32>
    %78 = vector.shape_cast %77 : vector<16xf32> to vector<16x1xf32>
    %cst_51 = arith.constant 3.125000e-02 : f32
    %79 = vector.broadcast %cst_51 : f32 to vector<16x1xf32>
    %80 = arith.mulf %78, %79 : vector<16x1xf32>
    %cst_52 = arith.constant 9.99999974E-6 : f32
    %81 = vector.broadcast %cst_52 : f32 to vector<16x1xf32>
    %82 = arith.addf %80, %81 : vector<16x1xf32>
    %83 = math.rsqrt %82 : vector<16x1xf32>
    %84 = vector.broadcast %83 : vector<16x1xf32> to vector<16x128xf32>
    %85 = arith.mulf %75, %84 : vector<16x128xf32>
    %86 = vector.broadcast %57 : vector<1x128xf32> to vector<16x128xf32>
    %87 = arith.mulf %85, %86 : vector<16x128xf32>
    %88 = vector.broadcast %59 : vector<1x128xf32> to vector<16x128xf32>
    %89 = arith.addf %87, %88 : vector<16x128xf32>
    %90 = arith.truncf %89 : vector<16x128xf32> to vector<16x128xbf16>
    %cst_53 = arith.constant dense<0.000000e+00> : vector<16x128xf32>
    %91 = tpu.matmul %90, %61, %cst_53 {dimension_numbers = #tpu.dot_dimension_numbers<[1], [0], [0], [1], [0, 0, 1, 1], [], []>} : vector<16x128xbf16>, vector<128x128xbf16>, vector<16x128xf32> -> vector<16x128xf32>
    %92 = vector.broadcast %63 : vector<1x128xf32> to vector<16x128xf32>
    %93 = arith.addf %91, %92 : vector<16x128xf32>
    %cst_54 = arith.constant 0.000000e+00 : f32
    %94 = vector.broadcast %cst_54 : f32 to vector<16x128xf32>
    %95 = arith.maximumf %93, %94 : vector<16x128xf32>
    %96 = arith.truncf %95 : vector<16x128xf32> to vector<16x128xbf16>
    %cst_55 = arith.constant dense<0.000000e+00> : vector<16x128xf32>
    %97 = tpu.matmul %96, %65, %cst_55 {dimension_numbers = #tpu.dot_dimension_numbers<[1], [0], [0], [1], [0, 0, 1, 1], [], []>} : vector<16x128xbf16>, vector<128x128xbf16>, vector<16x128xf32> -> vector<16x128xf32>
    %98 = vector.broadcast %67 : vector<1x128xf32> to vector<16x128xf32>
    %99 = arith.addf %97, %98 : vector<16x128xf32>
    %100 = arith.addf %55, %99 : vector<16x128xf32>
    %c0_56 = arith.constant 0 : index
    %c0_57 = arith.constant 0 : index
    %101 = vector.load %arg10[%c0_56, %c0_57] : memref<1x128xf32, #tpu.memory_space<vmem>>, vector<1x128xf32>
    %c0_58 = arith.constant 0 : index
    %c0_59 = arith.constant 0 : index
    %102 = vector.load %arg11[%c0_58, %c0_59] : memref<1x128xf32, #tpu.memory_space<vmem>>, vector<1x128xf32>
    %cst_60 = arith.constant dense<0.000000e+00> : vector<16xf32>
    %103 = vector.multi_reduction <add>, %100, %cst_60 [1] : vector<16x128xf32> to vector<16xf32>
    %104 = vector.shape_cast %103 : vector<16xf32> to vector<16x1xf32>
    %cst_61 = arith.constant 3.125000e-02 : f32
    %105 = vector.broadcast %cst_61 : f32 to vector<16x1xf32>
    %106 = arith.mulf %104, %105 : vector<16x1xf32>
    %107 = vector.broadcast %106 : vector<16x1xf32> to vector<16x128xf32>
    %108 = arith.subf %100, %107 : vector<16x128xf32>
    %109 = vector.broadcast %4 : vector<1x128xf32> to vector<16x128xf32>
    %110 = arith.mulf %108, %109 : vector<16x128xf32>
    %111 = arith.mulf %110, %110 : vector<16x128xf32>
    %cst_62 = arith.constant dense<0.000000e+00> : vector<16xf32>
    %112 = vector.multi_reduction <add>, %111, %cst_62 [1] : vector<16x128xf32> to vector<16xf32>
    %113 = vector.shape_cast %112 : vector<16xf32> to vector<16x1xf32>
    %cst_63 = arith.constant 3.125000e-02 : f32
    %114 = vector.broadcast %cst_63 : f32 to vector<16x1xf32>
    %115 = arith.mulf %113, %114 : vector<16x1xf32>
    %cst_64 = arith.constant 9.99999974E-6 : f32
    %116 = vector.broadcast %cst_64 : f32 to vector<16x1xf32>
    %117 = arith.addf %115, %116 : vector<16x1xf32>
    %118 = math.rsqrt %117 : vector<16x1xf32>
    %119 = vector.broadcast %118 : vector<16x1xf32> to vector<16x128xf32>
    %120 = arith.mulf %110, %119 : vector<16x128xf32>
    %121 = vector.broadcast %101 : vector<1x128xf32> to vector<16x128xf32>
    %122 = arith.mulf %120, %121 : vector<16x128xf32>
    %123 = vector.broadcast %102 : vector<1x128xf32> to vector<16x128xf32>
    %124 = arith.addf %122, %123 : vector<16x128xf32>
    %125 = arith.truncf %124 : vector<16x128xf32> to vector<16x128xbf16>
    %c0_65 = arith.constant 0 : index
    %c0_66 = arith.constant 0 : index
    %126 = vector.load %arg12[%c0_65, %c0_66] : memref<128x128xbf16, #tpu.memory_space<vmem>>, vector<128x128xbf16>
    %cst_67 = arith.constant dense<0.000000e+00> : vector<16x128xf32>
    %127 = tpu.matmul %125, %126, %cst_67 {dimension_numbers = #tpu.dot_dimension_numbers<[1], [0], [0], [1], [0, 0, 1, 1], [], []>} : vector<16x128xbf16>, vector<128x128xbf16>, vector<16x128xf32> -> vector<16x128xf32>
    %c0_68 = arith.constant 0 : index
    %c0_69 = arith.constant 0 : index
    %128 = vector.load %arg13[%c0_68, %c0_69] : memref<1x128xf32, #tpu.memory_space<vmem>>, vector<1x128xf32>
    %129 = vector.broadcast %128 : vector<1x128xf32> to vector<16x128xf32>
    %130 = arith.addf %127, %129 : vector<16x128xf32>
    %c0_70 = arith.constant 0 : index
    %c0_71 = arith.constant 0 : index
    %131 = vector.load %arg14[%c0_70, %c0_71] : memref<16x128xf32, #tpu.memory_space<vmem>>, vector<16x128xf32>
    tpu.vector_store %arg14[%c0_70, %c0_71], %130 {strides = array<i32>} : memref<16x128xf32, #tpu.memory_space<vmem>>, vector<16x128xf32>,
    return
  }
  func.func @transform_0(%arg0: i32) -> (i32, i32) {
    %c0_i32 = arith.constant 0 : i32
    %c0_i32_0 = arith.constant 0 : i32
    return %arg0, %c0_i32 : i32, i32
  }
  func.func @transform_1(%arg0: i32) -> (i32, i32) {
    %c0_i32 = arith.constant 0 : i32
    %c0_i32_0 = arith.constant 0 : i32
    %c0_i32_1 = arith.constant 0 : i32
    return %c0_i32, %c0_i32_0 : i32, i32
  }
  func.func @transform_2(%arg0: i32) -> (i32, i32) {
    %c0_i32 = arith.constant 0 : i32
    %c0_i32_0 = arith.constant 0 : i32
    %c0_i32_1 = arith.constant 0 : i32
    return %c0_i32, %c0_i32_0 : i32, i32
  }
  func.func @transform_3(%arg0: i32) -> (i32, i32, i32) {
    %c0_i32 = arith.constant 0 : i32
    %c0_i32_0 = arith.constant 0 : i32
    %c0_i32_1 = arith.constant 0 : i32
    %c0_i32_2 = arith.constant 0 : i32
    return %c0_i32, %c0_i32_0, %c0_i32_1 : i32, i32, i32
  }
  func.func @transform_4(%arg0: i32) -> (i32, i32, i32) {
    %c0_i32 = arith.constant 0 : i32
    %c0_i32_0 = arith.constant 0 : i32
    %c0_i32_1 = arith.constant 0 : i32
    %c0_i32_2 = arith.constant 0 : i32
    return %c0_i32, %c0_i32_0, %c0_i32_1 : i32, i32, i32
  }
  func.func @transform_5(%arg0: i32) -> (i32, i32, i32) {
    %c0_i32 = arith.constant 0 : i32
    %c0_i32_0 = arith.constant 0 : i32
    %c0_i32_1 = arith.constant 0 : i32
    %c0_i32_2 = arith.constant 0 : i32
    return %c0_i32, %c0_i32_0, %c0_i32_1 : i32, i32, i32
  }
  func.func @transform_6(%arg0: i32) -> (i32, i32, i32) {
    %c0_i32 = arith.constant 0 : i32
    %c0_i32_0 = arith.constant 0 : i32
    %c0_i32_1 = arith.constant 0 : i32
    %c0_i32_2 = arith.constant 0 : i32
    return %c0_i32, %c0_i32_0, %c0_i32_1 : i32, i32, i32
  }
  func.func @transform_7(%arg0: i32) -> (i32, i32, i32) {
    %c0_i32 = arith.constant 0 : i32
    %c0_i32_0 = arith.constant 0 : i32
    %c0_i32_1 = arith.constant 0 : i32
    %c0_i32_2 = arith.constant 0 : i32
    return %c0_i32, %c0_i32_0, %c0_i32_1 : i32, i32, i32
  }
  func.func @transform_8(%arg0: i32) -> (i32, i32, i32) {
    %c0_i32 = arith.constant 0 : i32
    %c0_i32_0 = arith.constant 0 : i32
    %c0_i32_1 = arith.constant 0 : i32
    %c0_i32_2 = arith.constant 0 : i32
    return %c0_i32, %c0_i32_0, %c0_i32_1 : i32, i32, i32
  }
  func.func @transform_9(%arg0: i32) -> (i32, i32) {
    %c0_i32 = arith.constant 0 : i32
    %c0_i32_0 = arith.constant 0 : i32
    %c0_i32_1 = arith.constant 0 : i32
    return %c0_i32, %c0_i32_0 : i32, i32
  }
  func.func @transform_10(%arg0: i32) -> (i32, i32) {
    %c0_i32 = arith.constant 0 : i32
    %c0_i32_0 = arith.constant 0 : i32
    %c0_i32_1 = arith.constant 0 : i32
    return %c0_i32, %c0_i32_0 : i32, i32
  }
  func.func @transform_11(%arg0: i32) -> (i32, i32) {
    %c0_i32 = arith.constant 0 : i32
    %c0_i32_0 = arith.constant 0 : i32
    %c0_i32_1 = arith.constant 0 : i32
    return %c0_i32, %c0_i32_0 : i32, i32
  }
  func.func @transform_12(%arg0: i32) -> (i32, i32) {
    %c0_i32 = arith.constant 0 : i32
    %c0_i32_0 = arith.constant 0 : i32
    %c0_i32_1 = arith.constant 0 : i32
    return %c0_i32, %c0_i32_0 : i32, i32
  }
  func.func @transform_13(%arg0: i32) -> (i32, i32) {
    %c0_i32 = arith.constant 0 : i32
    %c0_i32_0 = arith.constant 0 : i32
    return %arg0, %c0_i32 : i32, i32
  }
}

module attributes {stable_mosaic.version = 11 : i64} {
  func.func @simba_kernel(%arg0: i32, %arg1: memref<16x128xbf16, #tpu.memory_space<vmem>>, %arg2: memref<128x128xbf16, #tpu.memory_space<vmem>>, %arg3: memref<1x128xf32, #tpu.memory_space<vmem>>, %arg4: memref<2x1x128xf32, #tpu.memory_space<vmem>>, %arg5: memref<2x1x128xf32, #tpu.memory_space<vmem>>, %arg6: memref<2x128x128xbf16, #tpu.memory_space<vmem>>, %arg7: memref<2x1x128xf32, #tpu.memory_space<vmem>>, %arg8: memref<2x128x128xbf16, #tpu.memory_space<vmem>>, %arg9: memref<2x1x128xf32, #tpu.memory_space<vmem>>, %arg10: memref<1x128xf32, #tpu.memory_space<vmem>>, %arg11: memref<1x128xf32, #tpu.memory_space<vmem>>, %arg12: memref<128x128xbf16, #tpu.memory_space<vmem>>, %arg13: memref<1x128xf32, #tpu.memory_space<vmem>>, %arg14: memref<16x128xf32, #tpu.memory_space<vmem>>) attributes {dimension_semantics = [#tpu.dimension_semantics<parallel>], iteration_bounds = array<i64: 1>, scalar_prefetch = 0 : i64, scratch_operands = 0 : i64, tpu.core_type = #tpu.core_type<tc>, window_params = [{transform_indices = @transform_0, window_bounds = array<i64: 16, 128>}, {pipeline_mode = #tpu.pipeline_mode<synchronous>, transform_indices = @transform_1, window_bounds = array<i64: 128, 128>}, {pipeline_mode = #tpu.pipeline_mode<synchronous>, transform_indices = @transform_2, window_bounds = array<i64: 1, 128>}, {pipeline_mode = #tpu.pipeline_mode<synchronous>, transform_indices = @transform_3, window_bounds = array<i64: 2, 1, 128>}, {pipeline_mode = #tpu.pipeline_mode<synchronous>, transform_indices = @transform_4, window_bounds = array<i64: 2, 1, 128>}, {pipeline_mode = #tpu.pipeline_mode<synchronous>, transform_indices = @transform_5, window_bounds = array<i64: 2, 128, 128>}, {pipeline_mode = #tpu.pipeline_mode<synchronous>, transform_indices = @transform_6, window_bounds = array<i64: 2, 1, 128>}, {pipeline_mode = #tpu.pipeline_mode<synchronous>, transform_indices = @transform_7, window_bounds = array<i64: 2, 128, 128>}, {pipeline_mode = #tpu.pipeline_mode<synchronous>, transform_indices = @transform_8, window_bounds = array<i64: 2, 1, 128>}, {pipeline_mode = #tpu.pipeline_mode<synchronous>, transform_indices = @transform_9, window_bounds = array<i64: 1, 128>}, {pipeline_mode = #tpu.pipeline_mode<synchronous>, transform_indices = @transform_10, window_bounds = array<i64: 1, 128>}, {pipeline_mode = #tpu.pipeline_mode<synchronous>, transform_indices = @transform_11, window_bounds = array<i64: 128, 128>}, {pipeline_mode = #tpu.pipeline_mode<synchronous>, transform_indices = @transform_12, window_bounds = array<i64: 1, 128>}, {transform_indices = @transform_13, window_bounds = array<i64: 16, 128>}]} {
    %0 = tpu.iota {dimensions = array<i32: 1>} : vector<1x128xi32>
    %c32_i32 = arith.constant 32 : i32
    %1 = vector.broadcast %c32_i32 : i32 to vector<1x128xi32>
    %2 = arith.cmpi slt, %0, %1 : vector<1x128xi32>
    %3 = arith.extui %2 : vector<1x128xi1> to vector<1x128xi32>
    %4 = arith.sitofp %3 : vector<1x128xi32> to vector<1x128xf32>
    %c0 = arith.constant 0 : index
    %c0_0 = arith.constant 0 : index
    %5 = vector.load %arg1[%c0, %c0_0] : memref<16x128xbf16, #tpu.memory_space<vmem>>, vector<16x128xbf16>
    %c0_1 = arith.constant 0 : index
    %c0_2 = arith.constant 0 : index
    %6 = vector.load %arg2[%c0_1, %c0_2] : memref<128x128xbf16, #tpu.memory_space<vmem>>, vector<128x128xbf16>
    %cst = arith.constant dense<0.000000e+00> : vector<16x128xf32>
    %7 = tpu.matmul %5, %6, %cst {dimension_numbers = #tpu.dot_dimension_numbers<[1], [0], [0], [1], [0, 0, 1, 1], [], []>} : vector<16x128xbf16>, vector<128x128xbf16>, vector<16x128xf32> -> vector<16x128xf32>
    %c0_3 = arith.constant 0 : index
    %c0_4 = arith.constant 0 : index
    %8 = vector.load %arg3[%c0_3, %c0_4] : memref<1x128xf32, #tpu.memory_space<vmem>>, vector<1x128xf32>
    %9 = vector.broadcast %8 : vector<1x128xf32> to vector<16x128xf32>
    %10 = arith.addf %7, %9 : vector<16x128xf32>
    %c0_5 = arith.constant 0 : index
    %c0_6 = arith.constant 0 : index
    %c0_7 = arith.constant 0 : index
    %11 = vector.load %arg4[%c0_5, %c0_6, %c0_7] : memref<2x1x128xf32, #tpu.memory_space<vmem>>, vector<1x1x128xf32>
    %12 = vector.shape_cast %11 : vector<1x1x128xf32> to vector<1x128xf32>
    %c0_8 = arith.constant 0 : index
    %c0_9 = arith.constant 0 : index
    %c0_10 = arith.constant 0 : index
    %13 = vector.load %arg5[%c0_8, %c0_9, %c0_10] : memref<2x1x128xf32, #tpu.memory_space<vmem>>, vector<1x1x128xf32>
    %14 = vector.shape_cast %13 : vector<1x1x128xf32> to vector<1x128xf32>
    %c0_11 = arith.constant 0 : index
    %c0_12 = arith.constant 0 : index
    %c0_13 = arith.constant 0 : index
    %15 = vector.load %arg6[%c0_11, %c0_12, %c0_13] : memref<2x128x128xbf16, #tpu.memory_space<vmem>>, vector<1x128x128xbf16>
    %16 = vector.shape_cast %15 : vector<1x128x128xbf16> to vector<128x128xbf16>
    %c0_14 = arith.constant 0 : index
    %c0_15 = arith.constant 0 : index
    %c0_16 = arith.constant 0 : index
    %17 = vector.load %arg7[%c0_14, %c0_15, %c0_16] : memref<2x1x128xf32, #tpu.memory_space<vmem>>, vector<1x1x128xf32>
    %18 = vector.shape_cast %17 : vector<1x1x128xf32> to vector<1x128xf32>
    %c0_17 = arith.constant 0 : index
    %c0_18 = arith.constant 0 : index
    %c0_19 = arith.constant 0 : index
    %19 = vector.load %arg8[%c0_17, %c0_18, %c0_19] : memref<2x128x128xbf16, #tpu.memory_space<vmem>>, vector<1x128x128xbf16>
    %20 = vector.shape_cast %19 : vector<1x128x128xbf16> to vector<128x128xbf16>
    %c0_20 = arith.constant 0 : index
    %c0_21 = arith.constant 0 : index
    %c0_22 = arith.constant 0 : index
    %21 = vector.load %arg9[%c0_20, %c0_21, %c0_22] : memref<2x1x128xf32, #tpu.memory_space<vmem>>, vector<1x1x128xf32>
    %22 = vector.shape_cast %21 : vector<1x1x128xf32> to vector<1x128xf32>
    %cst_23 = arith.constant dense<0.000000e+00> : vector<16xf32>
    %23 = vector.multi_reduction <add>, %10, %cst_23 [1] : vector<16x128xf32> to vector<16xf32>
    %24 = vector.shape_cast %23 : vector<16xf32> to vector<16x1xf32>
    %cst_24 = arith.constant 3.125000e-02 : f32
    %25 = vector.broadcast %cst_24 : f32 to vector<16x1xf32>
    %26 = arith.mulf %24, %25 : vector<16x1xf32>
    %27 = vector.broadcast %26 : vector<16x1xf32> to vector<16x128xf32>
    %28 = arith.subf %10, %27 : vector<16x128xf32>
    %29 = vector.broadcast %4 : vector<1x128xf32> to vector<16x128xf32>
    %30 = arith.mulf %28, %29 : vector<16x128xf32>
    %31 = arith.mulf %30, %30 : vector<16x128xf32>
    %cst_25 = arith.constant dense<0.000000e+00> : vector<16xf32>
    %32 = vector.multi_reduction <add>, %31, %cst_25 [1] : vector<16x128xf32> to vector<16xf32>
    %33 = vector.shape_cast %32 : vector<16xf32> to vector<16x1xf32>
    %cst_26 = arith.constant 3.125000e-02 : f32
    %34 = vector.broadcast %cst_26 : f32 to vector<16x1xf32>
    %35 = arith.mulf %33, %34 : vector<16x1xf32>
    %cst_27 = arith.constant 9.99999974E-6 : f32
    %36 = vector.broadcast %cst_27 : f32 to vector<16x1xf32>
    %37 = arith.addf %35, %36 : vector<16x1xf32>
    %38 = math.rsqrt %37 : vector<16x1xf32>
    %39 = vector.broadcast %38 : vector<16x1xf32> to vector<16x128xf32>
    %40 = arith.mulf %30, %39 : vector<16x128xf32>
    %41 = vector.broadcast %12 : vector<1x128xf32> to vector<16x128xf32>
    %42 = arith.mulf %40, %41 : vector<16x128xf32>
    %43 = vector.broadcast %14 : vector<1x128xf32> to vector<16x128xf32>
    %44 = arith.addf %42, %43 : vector<16x128xf32>
    %45 = arith.truncf %44 : vector<16x128xf32> to vector<16x128xbf16>
    %cst_28 = arith.constant dense<0.000000e+00> : vector<16x128xf32>
    %46 = tpu.matmul %45, %16, %cst_28 {dimension_numbers = #tpu.dot_dimension_numbers<[1], [0], [0], [1], [0, 0, 1, 1], [], []>} : vector<16x128xbf16>, vector<128x128xbf16>, vector<16x128xf32> -> vector<16x128xf32>
    %47 = vector.broadcast %18 : vector<1x128xf32> to vector<16x128xf32>
    %48 = arith.addf %46, %47 : vector<16x128xf32>
    %cst_29 = arith.constant 0.000000e+00 : f32
    %49 = vector.broadcast %cst_29 : f32 to vector<16x128xf32>
    %50 = arith.maximumf %48, %49 : vector<16x128xf32>
    %51 = arith.truncf %50 : vector<16x128xf32> to vector<16x128xbf16>
    %cst_30 = arith.constant dense<0.000000e+00> : vector<16x128xf32>
    %52 = tpu.matmul %51, %20, %cst_30 {dimension_numbers = #tpu.dot_dimension_numbers<[1], [0], [0], [1], [0, 0, 1, 1], [], []>} : vector<16x128xbf16>, vector<128x128xbf16>, vector<16x128xf32> -> vector<16x128xf32>
    %53 = vector.broadcast %22 : vector<1x128xf32> to vector<16x128xf32>
    %54 = arith.addf %52, %53 : vector<16x128xf32>
    %55 = arith.addf %10, %54 : vector<16x128xf32>
    %c1 = arith.constant 1 : index
    %c0_31 = arith.constant 0 : index
    %c0_32 = arith.constant 0 : index
    %56 = vector.load %arg4[%c1, %c0_31, %c0_32] : memref<2x1x128xf32, #tpu.memory_space<vmem>>, vector<1x1x128xf32>
    %57 = vector.shape_cast %56 : vector<1x1x128xf32> to vector<1x128xf32>
    %c1_33 = arith.constant 1 : index
    %c0_34 = arith.constant 0 : index
    %c0_35 = arith.constant 0 : index
    %58 = vector.load %arg5[%c1_33, %c0_34, %c0_35] : memref<2x1x128xf32, #tpu.memory_space<vmem>>, vector<1x1x128xf32>
    %59 = vector.shape_cast %58 : vector<1x1x128xf32> to vector<1x128xf32>
    %c1_36 = arith.constant 1 : index
    %c0_37 = arith.constant 0 : index
    %c0_38 = arith.constant 0 : index
    %60 = vector.load %arg6[%c1_36, %c0_37, %c0_38] : memref<2x128x128xbf16, #tpu.memory_space<vmem>>, vector<1x128x128xbf16>
    %61 = vector.shape_cast %60 : vector<1x128x128xbf16> to vector<128x128xbf16>
    %c1_39 = arith.constant 1 : index
    %c0_40 = arith.constant 0 : index
    %c0_41 = arith.constant 0 : index
    %62 = vector.load %arg7[%c1_39, %c0_40, %c0_41] : memref<2x1x128xf32, #tpu.memory_space<vmem>>, vector<1x1x128xf32>
    %63 = vector.shape_cast %62 : vector<1x1x128xf32> to vector<1x128xf32>
    %c1_42 = arith.constant 1 : index
    %c0_43 = arith.constant 0 : index
    %c0_44 = arith.constant 0 : index
    %64 = vector.load %arg8[%c1_42, %c0_43, %c0_44] : memref<2x128x128xbf16, #tpu.memory_space<vmem>>, vector<1x128x128xbf16>
    %65 = vector.shape_cast %64 : vector<1x128x128xbf16> to vector<128x128xbf16>
    %c1_45 = arith.constant 1 : index
    %c0_46 = arith.constant 0 : index
    %c0_47 = arith.constant 0 : index
    %66 = vector.load %arg9[%c1_45, %c0_46, %c0_47] : memref<2x1x128xf32, #tpu.memory_space<vmem>>, vector<1x1x128xf32>
    %67 = vector.shape_cast %66 : vector<1x1x128xf32> to vector<1x128xf32>
    %cst_48 = arith.constant dense<0.000000e+00> : vector<16xf32>
    %68 = vector.multi_reduction <add>, %55, %cst_48 [1] : vector<16x128xf32> to vector<16xf32>
    %69 = vector.shape_cast %68 : vector<16xf32> to vector<16x1xf32>
    %cst_49 = arith.constant 3.125000e-02 : f32
    %70 = vector.broadcast %cst_49 : f32 to vector<16x1xf32>
    %71 = arith.mulf %69, %70 : vector<16x1xf32>
    %72 = vector.broadcast %71 : vector<16x1xf32> to vector<16x128xf32>
    %73 = arith.subf %55, %72 : vector<16x128xf32>
    %74 = vector.broadcast %4 : vector<1x128xf32> to vector<16x128xf32>
    %75 = arith.mulf %73, %74 : vector<16x128xf32>
    %76 = arith.mulf %75, %75 : vector<16x128xf32>
    %cst_50 = arith.constant dense<0.000000e+00> : vector<16xf32>
    %77 = vector.multi_reduction <add>, %76, %cst_50 [1] : vector<16x128xf32> to vector<16xf32>
    %78 = vector.shape_cast %77 : vector<16xf32> to vector<16x1xf32>
    %cst_51 = arith.constant 3.125000e-02 : f32
    %79 = vector.broadcast %cst_51 : f32 to vector<16x1xf32>
    %80 = arith.mulf %78, %79 : vector<16x1xf32>
    %cst_52 = arith.constant 9.99999974E-6 : f32
    %81 = vector.broadcast %cst_52 : f32 to vector<16x1xf32>
    %82 = arith.addf %80, %81 : vector<16x1xf32>
    %83 = math.rsqrt %82 : vector<16x1xf32>
    %84 = vector.broadcast %83 : vector<16x1xf32> to vector<16x128xf32>
    %85 = arith.mulf %75, %84 : vector<16x128xf32>
    %86 = vector.broadcast %57 : vector<1x128xf32> to vector<16x128xf32>
    %87 = arith.mulf %85, %86 : vector<16x128xf32>
    %88 = vector.broadcast %59 : vector<1x128xf32> to vector<16x128xf32>
    %89 = arith.addf %87, %88 : vector<16x128xf32>
    %90 = arith.truncf %89 : vector<16x128xf32> to vector<16x128xbf16>
    %cst_53 = arith.constant dense<0.000000e+00> : vector<16x128xf32>
    %91 = tpu.matmul %90, %61, %cst_53 {dimension_numbers = #tpu.dot_dimension_numbers<[1], [0], [0], [1], [0, 0, 1, 1], [], []>} : vector<16x128xbf16>, vector<128x128xbf16>, vector<16x128xf32> -> vector<16x128xf32>
    %92 = vector.broadcast %63 : vector<1x128xf32> to vector<16x128xf32>
    %93 = arith.addf %91, %92 : vector<16x128xf32>
    %cst_54 = arith.constant 0.000000e+00 : f32
    %94 = vector.broadcast %cst_54 : f32 to vector<16x128xf32>
    %95 = arith.maximumf %93, %94 : vector<16x128xf32>
    %96 = arith.truncf %95 : vector<16x128xf32> to vector<16x128xbf16>
    %cst_55 = arith.constant dense<0.000000e+00> : vector<16x128xf32>
    %97 = tpu.matmul %96, %65, %cst_55 {dimension_numbers = #tpu.dot_dimension_numbers<[1], [0], [0], [1], [0, 0, 1, 1], [], []>} : vector<16x128xbf16>, vector<128x128xbf16>, vector<16x128xf32> -> vector<16x128xf32>
    %98 = vector.broadcast %67 : vector<1x128xf32> to vector<16x128xf32>
    %99 = arith.addf %97, %98 : vector<16x128xf32>
    %100 = arith.addf %55, %99 : vector<16x128xf32>
    %c0_56 = arith.constant 0 : index
    %c0_57 = arith.constant 0 : index
    %101 = vector.load %arg10[%c0_56, %c0_57] : memref<1x128xf32, #tpu.memory_space<vmem>>, vector<1x128xf32>
    %c0_58 = arith.constant 0 : index
    %c0_59 = arith.constant 0 : index
    %102 = vector.load %arg11[%c0_58, %c0_59] : memref<1x128xf32, #tpu.memory_space<vmem>>, vector<1x128xf32>
    %cst_60 = arith.constant dense<0.000000e+00> : vector<16xf32>
    %103 = vector.multi_reduction <add>, %100, %cst_60 [1] : vector<16x128xf32> to vector<16xf32>
    %104 = vector.shape_cast %103 : vector<16xf32> to vector<16x1xf32>
    %cst_61 = arith.constant 3.125000e-02 : f32
    %105 = vector.broadcast %cst_61 : f32 to vector<16x1xf32>
    %106 = arith.mulf %104, %105 : vector<16x1xf32>
    %107 = vector.broadcast %106 : vector<16x1xf32> to vector<16x128xf32>
    %108 = arith.subf %100, %107 : vector<16x128xf32>
    %109 = vector.broadcast %4 : vector<1x128xf32> to vector<16x128xf32>
    %110 = arith.mulf %108, %109 : vector<16x128xf32>
    %111 = arith.mulf %110, %110 : vector<16x128xf32>
    %cst_62 = arith.constant dense<0.000000e+00> : vector<16xf32>
    %112 = vector.multi_reduction <add>, %111, %cst_62 [1] : vector<16x128xf32> to vector<16xf32>
    %113 = vector.shape_cast %112 : vector<16xf32> to vector<16x1xf32>
    %cst_63 = arith.constant 3.125000e-02 : f32
    %114 = vector.broadcast %cst_63 : f32 to vector<16x1xf32>
    %115 = arith.mulf %113, %114 : vector<16x1xf32>
    %cst_64 = arith.constant 9.99999974E-6 : f32
    %116 = vector.broadcast %cst_64 : f32 to vector<16x1xf32>
    %117 = arith.addf %115, %116 : vector<16x1xf32>
    %118 = math.rsqrt %117 : vector<16x1xf32>
    %119 = vector.broadcast %118 : vector<16x1xf32> to vector<16x128xf32>
    %120 = arith.mulf %110, %119 : vector<16x128xf32>
    %121 = vector.broadcast %101 : vector<1x128xf32> to vector<16x128xf32>
    %122 = arith.mulf %120, %121 : vector<16x128xf32>
    %123 = vector.broadcast %102 : vector<1x128xf32> to vector<16x128xf32>
    %124 = arith.addf %122, %123 : vector<16x128xf32>
    %125 = arith.truncf %124 : vector<16x128xf32> to vector<16x128xbf16>
    %c0_65 = arith.constant 0 : index
    %c0_66 = arith.constant 0 : index
    %126 = vector.load %arg12[%c0_65, %c0_66] : memref<128x128xbf16, #tpu.memory_space<vmem>>, vector<128x128xbf16>
    %cst_67 = arith.constant dense<0.000000e+00> : vector<16x128xf32>
    %127 = tpu.matmul %125, %126, %cst_67 {dimension_numbers = #tpu.dot_dimension_numbers<[1], [0], [0], [1], [0, 0, 1, 1], [], []>} : vector<16x128xbf16>, vector<128x128xbf16>, vector<16x128xf32> -> vector<16x128xf32>
    %c0_68 = arith.constant 0 : index
    %c0_69 = arith.constant 0 : index
    %128 = vector.load %arg13[%c0_68, %c0_69] : memref<1x128xf32, #tpu.memory_space<vmem>>, vector<1x128xf32>
    %129 = vector.broadcast %128 : vector<1x128xf32> to vector<16x128xf32>
    %130 = arith.addf %127, %129 : vector<16x128xf32>
    %c0_70 = arith.constant 0 : index
    %c0_71 = arith.constant 0 : index
    %131 = vector.load %arg14[%c0_70, %c0_71] : memref<16x128xf32, #tpu.memory_space<vmem>>, vector<16x128xf32>
    tpu.vector_store %arg14[%c0_70, %c0_71], %130 {strides = array<i32>} : memref<16x128xf32, #tpu.memory_space<vmem>>, vector<16x128xf32>,
    return
  }
  func.func @transform_0(%arg0: i32) -> (i32, i32) {
    %c0_i32 = arith.constant 0 : i32
    %c0_i32_0 = arith.constant 0 : i32
    return %arg0, %c0_i32 : i32, i32
  }
  func.func @transform_1(%arg0: i32) -> (i32, i32) {
    %c0_i32 = arith.constant 0 : i32
    %c0_i32_0 = arith.constant 0 : i32
    %c0_i32_1 = arith.constant 0 : i32
    return %c0_i32, %c0_i32_0 : i32, i32
  }
  func.func @transform_2(%arg0: i32) -> (i32, i32) {
    %c0_i32 = arith.constant 0 : i32
    %c0_i32_0 = arith.constant 0 : i32
    %c0_i32_1 = arith.constant 0 : i32
    return %c0_i32, %c0_i32_0 : i32, i32
  }
  func.func @transform_3(%arg0: i32) -> (i32, i32, i32) {
    %c0_i32 = arith.constant 0 : i32
    %c0_i32_0 = arith.constant 0 : i32
    %c0_i32_1 = arith.constant 0 : i32
    %c0_i32_2 = arith.constant 0 : i32
    return %c0_i32, %c0_i32_0, %c0_i32_1 : i32, i32, i32
  }
  func.func @transform_4(%arg0: i32) -> (i32, i32, i32) {
    %c0_i32 = arith.constant 0 : i32
    %c0_i32_0 = arith.constant 0 : i32
    %c0_i32_1 = arith.constant 0 : i32
    %c0_i32_2 = arith.constant 0 : i32
    return %c0_i32, %c0_i32_0, %c0_i32_1 : i32, i32, i32
  }
  func.func @transform_5(%arg0: i32) -> (i32, i32, i32) {
    %c0_i32 = arith.constant 0 : i32
    %c0_i32_0 = arith.constant 0 : i32
    %c0_i32_1 = arith.constant 0 : i32
    %c0_i32_2 = arith.constant 0 : i32
    return %c0_i32, %c0_i32_0, %c0_i32_1 : i32, i32, i32
  }
  func.func @transform_6(%arg0: i32) -> (i32, i32, i32) {
    %c0_i32 = arith.constant 0 : i32
    %c0_i32_0 = arith.constant 0 : i32
    %c0_i32_1 = arith.constant 0 : i32
    %c0_i32_2 = arith.constant 0 : i32
    return %c0_i32, %c0_i32_0, %c0_i32_1 : i32, i32, i32
  }
  func.func @transform_7(%arg0: i32) -> (i32, i32, i32) {
    %c0_i32 = arith.constant 0 : i32
    %c0_i32_0 = arith.constant 0 : i32
    %c0_i32_1 = arith.constant 0 : i32
    %c0_i32_2 = arith.constant 0 : i32
    return %c0_i32, %c0_i32_0, %c0_i32_1 : i32, i32, i32
  }
  func.func @transform_8(%arg0: i32) -> (i32, i32, i32) {
    %c0_i32 = arith.constant 0 : i32
    %c0_i32_0 = arith.constant 0 : i32
    %c0_i32_1 = arith.constant 0 : i32
    %c0_i32_2 = arith.constant 0 : i32
    return %c0_i32, %c0_i32_0, %c0_i32_1 : i32, i32, i32
  }
  func.func @transform_9(%arg0: i32) -> (i32, i32) {
    %c0_i32 = arith.constant 0 : i32
    %c0_i32_0 = arith.constant 0 : i32
    %c0_i32_1 = arith.constant 0 : i32
    return %c0_i32, %c0_i32_0 : i32, i32
  }
  func.func @transform_10(%arg0: i32) -> (i32, i32) {
    %c0_i32 = arith.constant 0 : i32
    %c0_i32_0 = arith.constant 0 : i32
    %c0_i32_1 = arith.constant 0 : i32
    return %c0_i32, %c0_i32_0 : i32, i32
  }
  func.func @transform_11(%arg0: i32) -> (i32, i32) {
    %c0_i32 = arith.constant 0 : i32
    %c0_i32_0 = arith.constant 0 : i32
    %c0_i32_1 = arith.constant 0 : i32
    return %c0_i32, %c0_i32_0 : i32, i32
  }
  func.func @transform_12(%arg0: i32) -> (i32, i32) {
    %c0_i32 = arith.constant 0 : i32
    %c0_i32_0 = arith.constant 0 : i32
    %c0_i32_1 = arith.constant 0 : i32
    return %c0_i32, %c0_i32_0 : i32, i32
  }
  func.func @transform_13(%arg0: i32) -> (i32, i32) {
    %c0_i32 = arith.constant 0 : i32
    %c0_i32_0 = arith.constant 0 : i32
    return %arg0, %c0_i32 : i32, i32
  }
}

</mosaic_0001>

<llo_original>
// kernel: tpu_custom_call.1
$region0: #{tpu_custom_call.1}
  #allocation0 [shape = 'u32[]', space=smem, size = 0x4, offset = 0x4, fixed_abs, tag = 'smem constant byte address 0x4 - core index']
  #allocation1 [shape = 'u32[72,128]{1,0:T(1,128)}', space=vmem, size = 0x9000, scoped, tag = 'internal scratch']
  %s0 = inlined_call_operand.hbm [shape: bf16[16,128], index: 0, kind: input, shape index: {}]
  %s1 = inlined_call_operand.hbm [shape: bf16[128,128], index: 1, kind: input, shape index: {}]
  %s2 = inlined_call_operand.hbm [shape: f32[1,128], index: 2, kind: input, shape index: {}]
  %s3 = inlined_call_operand.vmem [shape: f32[2,1,128], index: 3, kind: input, shape index: {}]
  %s4 = inlined_call_operand.hbm [shape: f32[2,1,128], index: 4, kind: input, shape index: {}]
  %s5 = inlined_call_operand.hbm [shape: bf16[2,128,128], index: 5, kind: input, shape index: {}]
  %s6 = inlined_call_operand.vmem [shape: f32[2,1,128], index: 6, kind: input, shape index: {}]
  %s7 = inlined_call_operand.hbm [shape: bf16[2,128,128], index: 7, kind: input, shape index: {}]
  %s8 = inlined_call_operand.vmem [shape: f32[2,1,128], index: 8, kind: input, shape index: {}]
  %s9 = inlined_call_operand.vmem [shape: f32[1,128], index: 9, kind: input, shape index: {}]
  %s10 = inlined_call_operand.vmem [shape: f32[1,128], index: 10, kind: input, shape index: {}]
  %s11 = inlined_call_operand.hbm [shape: bf16[128,128], index: 11, kind: input, shape index: {}]
  %s12 = inlined_call_operand.vmem [shape: f32[1,128], index: 12, kind: input, shape index: {}]
  %s13 = inlined_call_operand.hbm [shape: f32[16,128], index: 13, kind: output, shape index: {}]
  %s14 = sld [smem:[#allocation0]]
  $region90: #{tpu_custom_call.1} parent=0
    _
  %s16 = ssub.s32 1, %s14
  %s17 = scalar_select 0, %s16, %s14
  $region1: #{tpu_custom_call.1} parent=0
    #allocation2 [shape = 'u8[4096]{0}', space=vmem, size = 0x1000, scoped, tag = 'input window, operand 0, single buffered']
    #allocation3 [shape = 's32[1]{0}', space=sflag, size = 0x4, scoped, tag = 'scoped memory for tpu_custom_call.1']
    #allocation4 [shape = 's32[1]{0}', space=sflag, size = 0x4, scoped, tag = 'scoped memory for tpu_custom_call.1']
    #allocation5 [shape = 'u8[32768]{0}', space=vmem, size = 0x8000, scoped, tag = 'input window, operand 1, single buffered']
    #allocation6 [shape = 's32[1]{0}', space=sflag, size = 0x4, scoped, tag = 'scoped memory for tpu_custom_call.1']
    #allocation7 [shape = 'u8[512]{0}', space=vmem, size = 0x400, scoped, tag = 'input window, operand 2, single buffered']
    #allocation8 [shape = 'u8[1024]{0}', space=vmem, size = 0x400, scoped, tag = 'input window, operand 4, single buffered']
    #allocation9 [shape = 's32[1]{0}', space=sflag, size = 0x4, scoped, tag = 'scoped memory for tpu_custom_call.1']
    #allocation10 [shape = 'u8[65536]{0}', space=vmem, size = 0x10000, scoped, tag = 'input window, operand 5, single buffered']
    #allocation11 [shape = 'u8[65536]{0}', space=vmem, size = 0x10000, scoped, tag = 'input window, operand 7, single buffered']
    #allocation12 [shape = 's32[1]{0}', space=sflag, size = 0x4, scoped, tag = 'scoped memory for tpu_custom_call.1']
    #allocation13 [shape = 'u8[32768]{0}', space=vmem, size = 0x8000, scoped, tag = 'input window, operand 11, single buffered']
    #allocation14 [shape = 'u8[8192]{0}', space=vmem, size = 0x2000, scoped, tag = 'output window, operand 0, single buffered']
    %18 = vsyncpa [#allocation3], 0
    %19 = vsyncpa [#allocation6], 0
    %20 = vsyncpa [#allocation9], 0
    %21 = vsyncpa [#allocation12], 0
    %22 = vsyncpa [#allocation4], 0
    // Predicated region
    $region2: #{tpu_custom_call.1} parent=1 // pred_check
      _
    $region3: #{tpu_custom_call.1} parent=1 // pred_check_branch
      %24 = sbr.rel (0) target = $region5
    $region4: #{tpu_custom_call.1} parent=1 // pred_region
      %26 = vsyncadd [#allocation3], 0
      %s27 = sshll.u32 %s0, 4
      %s28 = int_to_ptr.hbm [resolvable:$true] %s27
      %s29 = sshll.u32 [#allocation2], 4
      %s30 = int_to_ptr.vmem [resolvable:$true] %s29
      %35 = dma.hbm_to_vmem [thread:$0]  %s28, 128, %s30, [#allocation3], 64, 64, 4
    $region5: #{tpu_custom_call.1} parent=1 // pred_fallthru
      _
    // Predicated region
    $region6: #{tpu_custom_call.1} parent=1 // pred_check
      _
    $region7: #{tpu_custom_call.1} parent=1 // pred_check_branch
      %37 = sbr.rel (0) target = $region9
    $region8: #{tpu_custom_call.1} parent=1 // pred_region
      %39 = vsyncadd [#allocation6], 0
      %s40 = sshll.u32 %s1, 4
      %s41 = int_to_ptr.hbm [resolvable:$true] %s40
      %s42 = sshll.u32 [#allocation5], 4
      %s43 = int_to_ptr.vmem [resolvable:$true] %s42
      %48 = dma.hbm_to_vmem [thread:$0]  %s41, 1024, %s43, [#allocation6], 64, 64, 4
    $region9: #{tpu_custom_call.1} parent=1 // pred_fallthru
      _
    // Predicated region
    $region10: #{tpu_custom_call.1} parent=1 // pred_check
      _
    $region11: #{tpu_custom_call.1} parent=1 // pred_check_branch
      %50 = sbr.rel (0) target = $region13
    $region12: #{tpu_custom_call.1} parent=1 // pred_region
      %52 = vsyncadd [#allocation6], 0
      %s54 = sshll.u32 %s2, 4
      %s55 = int_to_ptr.hbm [resolvable:$true] %s54
      %s56 = sshll.u32 [#allocation7], 4
      %s57 = int_to_ptr.vmem [resolvable:$true] %s56
      %59 = dma.hbm_to_vmem [thread:$0]  %s55, 16, %s57, [#allocation6]
    $region13: #{tpu_custom_call.1} parent=1 // pred_fallthru
      _
    // Predicated region
    $region14: #{tpu_custom_call.1} parent=1 // pred_check
      _
    $region15: #{tpu_custom_call.1} parent=1 // pred_check_branch
      %61 = sbr.rel (0) target = $region17
    $region16: #{tpu_custom_call.1} parent=1 // pred_region
      _
    $region17: #{tpu_custom_call.1} parent=1 // pred_fallthru
      _
    // Predicated region
    $region18: #{tpu_custom_call.1} parent=1 // pred_check
      _
    $region19: #{tpu_custom_call.1} parent=1 // pred_check_branch
      %63 = sbr.rel (0) target = $region21
    $region20: #{tpu_custom_call.1} parent=1 // pred_region
      %65 = vsyncadd [#allocation9], 0
      %s66 = sshll.u32 %s4, 4
      %s67 = int_to_ptr.hbm [resolvable:$true] %s66
      %s68 = sshll.u32 [#allocation8], 4
      %s69 = int_to_ptr.vmem [resolvable:$true] %s68
      %74 = dma.hbm_to_vmem [thread:$0]  %s67, 32, %s69, [#allocation9], 16, 16, 1
    $region21: #{tpu_custom_call.1} parent=1 // pred_fallthru
      _
    // Predicated region
    $region22: #{tpu_custom_call.1} parent=1 // pred_check
      _
    $region23: #{tpu_custom_call.1} parent=1 // pred_check_branch
      %76 = sbr.rel (0) target = $region25
    $region24: #{tpu_custom_call.1} parent=1 // pred_region
      %78 = vsyncadd [#allocation9], 0
      %s79 = sshll.u32 %s5, 4
      %s80 = int_to_ptr.hbm [resolvable:$true] %s79
      %s81 = sshll.u32 [#allocation10], 4
      %s82 = int_to_ptr.vmem [resolvable:$true] %s81
      %87 = dma.hbm_to_vmem [thread:$0]  %s80, 2048, %s82, [#allocation9], 64, 64, 4
    $region25: #{tpu_custom_call.1} parent=1 // pred_fallthru
      _
    // Predicated region
    $region26: #{tpu_custom_call.1} parent=1 // pred_check
      _
    $region27: #{tpu_custom_call.1} parent=1 // pred_check_branch
      %89 = sbr.rel (0) target = $region29
    $region28: #{tpu_custom_call.1} parent=1 // pred_region
      _
    $region29: #{tpu_custom_call.1} parent=1 // pred_fallthru
      _
    // Predicated region
    $region30: #{tpu_custom_call.1} parent=1 // pred_check
      _
    $region31: #{tpu_custom_call.1} parent=1 // pred_check_branch
      %91 = sbr.rel (0) target = $region33
    $region32: #{tpu_custom_call.1} parent=1 // pred_region
      %93 = vsyncadd [#allocation12], 0
      %s94 = sshll.u32 %s7, 4
      %s95 = int_to_ptr.hbm [resolvable:$true] %s94
      %s96 = sshll.u32 [#allocation11], 4
      %s97 = int_to_ptr.vmem [resolvable:$true] %s96
      %102 = dma.hbm_to_vmem [thread:$0]  %s95, 2048, %s97, [#allocation12], 64, 64, 4
    $region33: #{tpu_custom_call.1} parent=1 // pred_fallthru
      _
    // Predicated region
    $region34: #{tpu_custom_call.1} parent=1 // pred_check
      _
    $region35: #{tpu_custom_call.1} parent=1 // pred_check_branch
      %104 = sbr.rel (0) target = $region37
    $region36: #{tpu_custom_call.1} parent=1 // pred_region
      _
    $region37: #{tpu_custom_call.1} parent=1 // pred_fallthru
      _
    // Predicated region
    $region38: #{tpu_custom_call.1} parent=1 // pred_check
      _
    $region39: #{tpu_custom_call.1} parent=1 // pred_check_branch
      %106 = sbr.rel (0) target = $region41
    $region40: #{tpu_custom_call.1} parent=1 // pred_region
      _
    $region41: #{tpu_custom_call.1} parent=1 // pred_fallthru
      _
    // Predicated region
    $region42: #{tpu_custom_call.1} parent=1 // pred_check
      _
    $region43: #{tpu_custom_call.1} parent=1 // pred_check_branch
      %108 = sbr.rel (0) target = $region45
    $region44: #{tpu_custom_call.1} parent=1 // pred_region
      _
    $region45: #{tpu_custom_call.1} parent=1 // pred_fallthru
      _
    // Predicated region
    $region46: #{tpu_custom_call.1} parent=1 // pred_check
      _
    $region47: #{tpu_custom_call.1} parent=1 // pred_check_branch
      %110 = sbr.rel (0) target = $region49
    $region48: #{tpu_custom_call.1} parent=1 // pred_region
      %112 = vsyncadd [#allocation12], 0
      %s113 = sshll.u32 %s11, 4
      %s114 = int_to_ptr.hbm [resolvable:$true] %s113
      %s115 = sshll.u32 [#allocation13], 4
      %s116 = int_to_ptr.vmem [resolvable:$true] %s115
      %121 = dma.hbm_to_vmem [thread:$0]  %s114, 1024, %s116, [#allocation12], 64, 64, 4
    $region49: #{tpu_custom_call.1} parent=1 // pred_fallthru
      _
    // Predicated region
    $region50: #{tpu_custom_call.1} parent=1 // pred_check
      _
    $region51: #{tpu_custom_call.1} parent=1 // pred_check_branch
      %123 = sbr.rel (0) target = $region53
    $region52: #{tpu_custom_call.1} parent=1 // pred_region
      _
    $region53: #{tpu_custom_call.1} parent=1 // pred_fallthru
      _
    // Predicated region
    $region54: #{tpu_custom_call.1} parent=1 // pred_check
      _
    $region55: #{tpu_custom_call.1} parent=1 // pred_check_branch
      %125 = sbr.rel (0) target = $region57
    $region56: #{tpu_custom_call.1} parent=1 // pred_region
      %127 = dma.done [#allocation3], 128
    $region57: #{tpu_custom_call.1} parent=1 // pred_fallthru
      _
    // Predicated region
    $region58: #{tpu_custom_call.1} parent=1 // pred_check
      _
    $region59: #{tpu_custom_call.1} parent=1 // pred_check_branch
      %129 = sbr.rel (0) target = $region61
    $region60: #{tpu_custom_call.1} parent=1 // pred_region
      %131 = dma.done [#allocation6], 1024
    $region61: #{tpu_custom_call.1} parent=1 // pred_fallthru
      _
    // Predicated region
    $region62: #{tpu_custom_call.1} parent=1 // pred_check
      _
    $region63: #{tpu_custom_call.1} parent=1 // pred_check_branch
      %133 = sbr.rel (0) target = $region65
    $region64: #{tpu_custom_call.1} parent=1 // pred_region
      %135 = dma.done [#allocation6], 16
    $region65: #{tpu_custom_call.1} parent=1 // pred_fallthru
      _
    // Predicated region
    $region66: #{tpu_custom_call.1} parent=1 // pred_check
      _
    $region67: #{tpu_custom_call.1} parent=1 // pred_check_branch
      %137 = sbr.rel (0) target = $region69
    $region68: #{tpu_custom_call.1} parent=1 // pred_region
      %139 = dma.done [#allocation9], 32
    $region69: #{tpu_custom_call.1} parent=1 // pred_fallthru
      _
    // Predicated region
    $region70: #{tpu_custom_call.1} parent=1 // pred_check
      _
    $region71: #{tpu_custom_call.1} parent=1 // pred_check_branch
      %141 = sbr.rel (0) target = $region73
    $region72: #{tpu_custom_call.1} parent=1 // pred_region
      %143 = dma.done [#allocation9], 2048
    $region73: #{tpu_custom_call.1} parent=1 // pred_fallthru
      _
    // Predicated region
    $region74: #{tpu_custom_call.1} parent=1 // pred_check
      _
    $region75: #{tpu_custom_call.1} parent=1 // pred_check_branch
      %145 = sbr.rel (0) target = $region77
    $region76: #{tpu_custom_call.1} parent=1 // pred_region
      %147 = dma.done [#allocation12], 2048
    $region77: #{tpu_custom_call.1} parent=1 // pred_fallthru
      _
    // Predicated region
    $region78: #{tpu_custom_call.1} parent=1 // pred_check
      _
    $region79: #{tpu_custom_call.1} parent=1 // pred_check_branch
      %149 = sbr.rel (0) target = $region81
    $region80: #{tpu_custom_call.1} parent=1 // pred_region
      %151 = dma.done [#allocation12], 1024
    $region81: #{tpu_custom_call.1} parent=1 // pred_fallthru
      _
    %v152 = vlaneseq
    %v153 = vand.u32 %v152, 127
    %vm154 = vcmp.lt.s32.totalorder %v153, 32
    %v155 = vsel %vm154, 1, 0
    %v156 = vcvt.s32.f32 %v155
    %v157 = vld [vmem:[#allocation2] sm:$0xf]
    %v158 = vld [vmem:[#allocation2 + $0x4] sm:$0xf]
    %v159 = vld [vmem:[#allocation5] sm:$0xf]
    %v160 = vld [vmem:[#allocation5 + $0x4] sm:$0xf]
    %v161 = vld [vmem:[#allocation5 + $0x8] sm:$0xf]
    %v162 = vld [vmem:[#allocation5 + $0xc] sm:$0xf]
    %v163 = vld [vmem:[#allocation5 + $0x10] sm:$0xf]
    %v164 = vld [vmem:[#allocation5 + $0x14] sm:$0xf]
    %v165 = vld [vmem:[#allocation5 + $0x18] sm:$0xf]
    %v166 = vld [vmem:[#allocation5 + $0x1c] sm:$0xf]
    %v167 = vld [vmem:[#allocation5 + $0x20] sm:$0xf]
    %v168 = vld [vmem:[#allocation5 + $0x24] sm:$0xf]
    %v169 = vld [vmem:[#allocation5 + $0x28] sm:$0xf]
    %v170 = vld [vmem:[#allocation5 + $0x2c] sm:$0xf]
    %v171 = vld [vmem:[#allocation5 + $0x30] sm:$0xf]
    %v172 = vld [vmem:[#allocation5 + $0x34] sm:$0xf]
    %v173 = vld [vmem:[#allocation5 + $0x38] sm:$0xf]
    %v174 = vld [vmem:[#allocation5 + $0x3c] sm:$0xf]
    %v175 = vld [vmem:[#allocation7] sm:$0x1]
    %v177 = vperm.slane %v175, 0
    %v181 = vunpack.c.l.b16 %v157
    %v182 = vunpack.c.l.b16 %v158
    %v183 = vpack.c.b16 %v182, %v181
    %v201 = vunpack.c.l.b16 %v159
    %v202 = vunpack.c.l.b16 %v160
    %v203 = vunpack.c.l.b16 %v161
    %v204 = vunpack.c.l.b16 %v162
    %v205 = vunpack.c.l.b16 %v163
    %v206 = vunpack.c.l.b16 %v164
    %v207 = vunpack.c.l.b16 %v165
    %v208 = vunpack.c.l.b16 %v166
    %v209 = vunpack.c.l.b16 %v167
    %v210 = vunpack.c.l.b16 %v168
    %v211 = vunpack.c.l.b16 %v169
    %v212 = vunpack.c.l.b16 %v170
    %v213 = vunpack.c.l.b16 %v171
    %v214 = vunpack.c.l.b16 %v172
    %v215 = vunpack.c.l.b16 %v173
    %v216 = vunpack.c.l.b16 %v174
    %v217 = vpack.c.b16 %v202, %v201
    %v218 = vpack.c.b16 %v204, %v203
    %v219 = vpack.c.b16 %v206, %v205
    %v220 = vpack.c.b16 %v208, %v207
    %v221 = vpack.c.b16 %v210, %v209
    %v222 = vpack.c.b16 %v212, %v211
    %v223 = vpack.c.b16 %v214, %v213
    %v224 = vpack.c.b16 %v216, %v215
    %233 = vmatpush.bf16.msra.mxu0 %v224
    %234 = vmatpush.bf16.msra.mxu0 %v223
    %235 = vmatpush.bf16.msra.mxu0 %v222
    %236 = vmatpush.bf16.msra.mxu0 %v221
    %237 = vmatpush.bf16.msra.mxu0 %v220
    %238 = vmatpush.bf16.msra.mxu0 %v219
    %239 = vmatpush.bf16.msra.mxu0 %v218
    %240 = vmatpush.bf16.msra.mxu0 %v217
    %241 = vmatmul.bf16.gmra.mxu0 %v183
    %v242 = vpop.f32.mrf.mxu0
    %v243 = vadd.f32 %v177, %v242
    %v244 = vpop.f32.mrf.mxu0
    %v245 = vadd.f32 %v177, %v244
    %246 = vdwg.mxu0
    %v247 = vld [vmem:[%s3] sm:$0x1]
    %v248 = vld [vmem:[#allocation8] sm:$0x1]
    %v249 = vld [vmem:[#allocation10] sm:$0xf]
    %v250 = vld [vmem:[#allocation10 + $0x4] sm:$0xf]
    %v251 = vld [vmem:[#allocation10 + $0x8] sm:$0xf]
    %v252 = vld [vmem:[#allocation10 + $0xc] sm:$0xf]
    %v253 = vld [vmem:[#allocation10 + $0x10] sm:$0xf]
    %v254 = vld [vmem:[#allocation10 + $0x14] sm:$0xf]
    %v255 = vld [vmem:[#allocation10 + $0x18] sm:$0xf]
    %v256 = vld [vmem:[#allocation10 + $0x1c] sm:$0xf]
    %v257 = vld [vmem:[#allocation10 + $0x20] sm:$0xf]
    %v258 = vld [vmem:[#allocation10 + $0x24] sm:$0xf]
    %v259 = vld [vmem:[#allocation10 + $0x28] sm:$0xf]
    %v260 = vld [vmem:[#allocation10 + $0x2c] sm:$0xf]
    %v261 = vld [vmem:[#allocation10 + $0x30] sm:$0xf]
    %v262 = vld [vmem:[#allocation10 + $0x34] sm:$0xf]
    %v263 = vld [vmem:[#allocation10 + $0x38] sm:$0xf]
    %v264 = vld [vmem:[#allocation10 + $0x3c] sm:$0xf]
    %v265 = vld [vmem:[%s6] sm:$0x1]
    %v266 = vld [vmem:[#allocation11] sm:$0xf]
    %v267 = vld [vmem:[#allocation11 + $0x4] sm:$0xf]
    %v268 = vld [vmem:[#allocation11 + $0x8] sm:$0xf]
    %v269 = vld [vmem:[#allocation11 + $0xc] sm:$0xf]
    %v270 = vld [vmem:[#allocation11 + $0x10] sm:$0xf]
    %v271 = vld [vmem:[#allocation11 + $0x14] sm:$0xf]
    %v272 = vld [vmem:[#allocation11 + $0x18] sm:$0xf]
    %v273 = vld [vmem:[#allocation11 + $0x1c] sm:$0xf]
    %v274 = vld [vmem:[#allocation11 + $0x20] sm:$0xf]
    %v275 = vld [vmem:[#allocation11 + $0x24] sm:$0xf]
    %v276 = vld [vmem:[#allocation11 + $0x28] sm:$0xf]
    %v277 = vld [vmem:[#allocation11 + $0x2c] sm:$0xf]
    %v278 = vld [vmem:[#allocation11 + $0x30] sm:$0xf]
    %v279 = vld [vmem:[#allocation11 + $0x34] sm:$0xf]
    %v280 = vld [vmem:[#allocation11 + $0x38] sm:$0xf]
    %v281 = vld [vmem:[#allocation11 + $0x3c] sm:$0xf]
    %v282 = vld [vmem:[%s8] sm:$0x1]
    %283 = vadd.xlane.f32.xlu0 %v243
    %v284 = vpop.xlane.xlu0 %283
    %285 = vadd.xlane.f32.xlu0 %v245
    %v286 = vpop.xlane.xlu0 %285
    %v287 = vmul.f32 %v284, 0.03125
    %v288 = vmul.f32 %v286, 0.03125
    %v289 = vsub.f32 %v243, %v287
    %v290 = vsub.f32 %v245, %v288
    %v291 = vmul.f32 %v289, %v156
    %v292 = vmul.f32 %v290, %v156
    %v293 = vmul.f32 %v291, %v291
    %v294 = vmul.f32 %v292, %v292
    %295 = vadd.xlane.f32.xlu0 %v293
    %v296 = vpop.xlane.xlu0 %295
    %297 = vadd.xlane.f32.xlu0 %v294
    %v298 = vpop.xlane.xlu0 %297
    %v299 = vmul.f32 %v296, 0.03125
    %v300 = vmul.f32 %v298, 0.03125
    %v301 = vadd.f32 %v299, 1e-05
    %v302 = vadd.f32 %v300, 1e-05
    %v303 = vrsqrt.pop %v301
    %v304 = vmul.f32 %v303, %v301
    %v305 = vmul.f32 %v304, %v303
    %v306 = vmul.f32 0.5, %v305
    %v307 = vsub.f32 1.5, %v306
    %v308 = vmul.f32 %v303, %v307
    %vm309 = vweird.f32 %v301
    %vm310 = vweird.f32 %v303
    %vm311 = vmor %vm309, %vm310
    %v312 = vsel %vm311, %v303, %v308
    %v313 = vrsqrt.pop %v302
    %v314 = vmul.f32 %v313, %v302
    %v315 = vmul.f32 %v314, %v313
    %v316 = vmul.f32 0.5, %v315
    %v317 = vsub.f32 1.5, %v316
    %v318 = vmul.f32 %v313, %v317
    %vm319 = vweird.f32 %v302
    %vm320 = vweird.f32 %v313
    %vm321 = vmor %vm319, %vm320
    %v322 = vsel %vm321, %v313, %v318
    %v323 = vmul.f32 %v291, %v312
    %v324 = vmul.f32 %v292, %v322
    %v326 = vperm.slane %v247, 0
    %v328 = vmul.f32 %v323, %v326
    %v329 = vmul.f32 %v324, %v326
    %v331 = vperm.slane %v248, 0
    %v333 = vadd.f32 %v328, %v331
    %v334 = vadd.f32 %v329, %v331
    %v335 = vpack.c.bf16 %v334, %v333
    %v337 = vperm.slane %v265, 0
    %v355 = vunpack.c.l.b16 %v249
    %v356 = vunpack.c.l.b16 %v250
    %v357 = vunpack.c.l.b16 %v251
    %v358 = vunpack.c.l.b16 %v252
    %v359 = vunpack.c.l.b16 %v253
    %v360 = vunpack.c.l.b16 %v254
    %v361 = vunpack.c.l.b16 %v255
    %v362 = vunpack.c.l.b16 %v256
    %v363 = vunpack.c.l.b16 %v257
    %v364 = vunpack.c.l.b16 %v258
    %v365 = vunpack.c.l.b16 %v259
    %v366 = vunpack.c.l.b16 %v260
    %v367 = vunpack.c.l.b16 %v261
    %v368 = vunpack.c.l.b16 %v262
    %v369 = vunpack.c.l.b16 %v263
    %v370 = vunpack.c.l.b16 %v264
    %v371 = vpack.c.b16 %v356, %v355
    %v372 = vpack.c.b16 %v358, %v357
    %v373 = vpack.c.b16 %v360, %v359
    %v374 = vpack.c.b16 %v362, %v361
    %v375 = vpack.c.b16 %v364, %v363
    %v376 = vpack.c.b16 %v366, %v365
    %v377 = vpack.c.b16 %v368, %v367
    %v378 = vpack.c.b16 %v370, %v369
    %387 = vmatpush.bf16.msra.mxu0 %v378
    %388 = vmatpush.bf16.msra.mxu0 %v377
    %389 = vmatpush.bf16.msra.mxu0 %v376
    %390 = vmatpush.bf16.msra.mxu0 %v375
    %391 = vmatpush.bf16.msra.mxu0 %v374
    %392 = vmatpush.bf16.msra.mxu0 %v373
    %393 = vmatpush.bf16.msra.mxu0 %v372
    %394 = vmatpush.bf16.msra.mxu0 %v371
    %395 = vmatmul.bf16.gmra.mxu0 %v335
    %v396 = vpop.f32.mrf.mxu0
    %v397 = vadd.f32 %v337, %v396
    %v398 = vpop.f32.mrf.mxu0
    %v399 = vadd.f32 %v337, %v398
    %400 = vdwg.mxu0
    %v401 = vmax.f32 %v397, 0.0
    %v402 = vmax.f32 %v399, 0.0
    %v403 = vpack.c.bf16 %v402, %v401
    %v405 = vperm.slane %v282, 0
    %v423 = vunpack.c.l.b16 %v266
    %v424 = vunpack.c.l.b16 %v267
    %v425 = vunpack.c.l.b16 %v268
    %v426 = vunpack.c.l.b16 %v269
    %v427 = vunpack.c.l.b16 %v270
    %v428 = vunpack.c.l.b16 %v271
    %v429 = vunpack.c.l.b16 %v272
    %v430 = vunpack.c.l.b16 %v273
    %v431 = vunpack.c.l.b16 %v274
    %v432 = vunpack.c.l.b16 %v275
    %v433 = vunpack.c.l.b16 %v276
    %v434 = vunpack.c.l.b16 %v277
    %v435 = vunpack.c.l.b16 %v278
    %v436 = vunpack.c.l.b16 %v279
    %v437 = vunpack.c.l.b16 %v280
    %v438 = vunpack.c.l.b16 %v281
    %v439 = vpack.c.b16 %v424, %v423
    %v440 = vpack.c.b16 %v426, %v425
    %v441 = vpack.c.b16 %v428, %v427
    %v442 = vpack.c.b16 %v430, %v429
    %v443 = vpack.c.b16 %v432, %v431
    %v444 = vpack.c.b16 %v434, %v433
    %v445 = vpack.c.b16 %v436, %v435
    %v446 = vpack.c.b16 %v438, %v437
    %455 = vmatpush.bf16.msra.mxu0 %v446
    %456 = vmatpush.bf16.msra.mxu0 %v445
    %457 = vmatpush.bf16.msra.mxu0 %v444
    %458 = vmatpush.bf16.msra.mxu0 %v443
    %459 = vmatpush.bf16.msra.mxu0 %v442
    %460 = vmatpush.bf16.msra.mxu0 %v441
    %461 = vmatpush.bf16.msra.mxu0 %v440
    %462 = vmatpush.bf16.msra.mxu0 %v439
    %463 = vmatmul.bf16.gmra.mxu0 %v403
    %v464 = vpop.f32.mrf.mxu0
    %v465 = vadd.f32 %v405, %v464
    %v466 = vpop.f32.mrf.mxu0
    %v467 = vadd.f32 %v405, %v466
    %468 = vdwg.mxu0
    %v469 = vadd.f32 %v243, %v465
    %v470 = vadd.f32 %v245, %v467
    %s471 = scalar_lea.vmem %s3, 1
    %v472 = vld [vmem:[%s471] sm:$0x1]
    %s473 = scalar_lea.vmem [#allocation8], 1
    %v474 = vld [vmem:[%s473] sm:$0x1]
    %s475 = scalar_lea.vmem [#allocation10], 64
    %v476 = vld [vmem:[%s475] sm:$0xf]
    %v477 = vld [vmem:[%s475 + $0x4] sm:$0xf]
    %v478 = vld [vmem:[%s475 + $0x8] sm:$0xf]
    %v479 = vld [vmem:[%s475 + $0xc] sm:$0xf]
    %v480 = vld [vmem:[%s475 + $0x10] sm:$0xf]
    %v481 = vld [vmem:[%s475 + $0x14] sm:$0xf]
    %v482 = vld [vmem:[%s475 + $0x18] sm:$0xf]
    %v483 = vld [vmem:[%s475 + $0x1c] sm:$0xf]
    %v484 = vld [vmem:[%s475 + $0x20] sm:$0xf]
    %v485 = vld [vmem:[%s475 + $0x24] sm:$0xf]
    %v486 = vld [vmem:[%s475 + $0x28] sm:$0xf]
    %v487 = vld [vmem:[%s475 + $0x2c] sm:$0xf]
    %v488 = vld [vmem:[%s475 + $0x30] sm:$0xf]
    %v489 = vld [vmem:[%s475 + $0x34] sm:$0xf]
    %v490 = vld [vmem:[%s475 + $0x38] sm:$0xf]
    %v491 = vld [vmem:[%s475 + $0x3c] sm:$0xf]
    %s492 = scalar_lea.vmem %s6, 1
    %v493 = vld [vmem:[%s492] sm:$0x1]
    %s494 = scalar_lea.vmem [#allocation11], 64
    %v495 = vld [vmem:[%s494] sm:$0xf]
    %v496 = vld [vmem:[%s494 + $0x4] sm:$0xf]
    %v497 = vld [vmem:[%s494 + $0x8] sm:$0xf]
    %v498 = vld [vmem:[%s494 + $0xc] sm:$0xf]
    %v499 = vld [vmem:[%s494 + $0x10] sm:$0xf]
    %v500 = vld [vmem:[%s494 + $0x14] sm:$0xf]
    %v501 = vld [vmem:[%s494 + $0x18] sm:$0xf]
    %v502 = vld [vmem:[%s494 + $0x1c] sm:$0xf]
    %v503 = vld [vmem:[%s494 + $0x20] sm:$0xf]
    %v504 = vld [vmem:[%s494 + $0x24] sm:$0xf]
    %v505 = vld [vmem:[%s494 + $0x28] sm:$0xf]
    %v506 = vld [vmem:[%s494 + $0x2c] sm:$0xf]
    %v507 = vld [vmem:[%s494 + $0x30] sm:$0xf]
    %v508 = vld [vmem:[%s494 + $0x34] sm:$0xf]
    %v509 = vld [vmem:[%s494 + $0x38] sm:$0xf]
    %v510 = vld [vmem:[%s494 + $0x3c] sm:$0xf]
    %s511 = scalar_lea.vmem %s8, 1
    %v512 = vld [vmem:[%s511] sm:$0x1]
    %513 = vadd.xlane.f32.xlu0 %v469
    %v514 = vpop.xlane.xlu0 %513
    %515 = vadd.xlane.f32.xlu0 %v470
    %v516 = vpop.xlane.xlu0 %515
    %v517 = vmul.f32 %v514, 0.03125
    %v518 = vmul.f32 %v516, 0.03125
    %v519 = vsub.f32 %v469, %v517
    %v520 = vsub.f32 %v470, %v518
    %v521 = vmul.f32 %v519, %v156
    %v522 = vmul.f32 %v520, %v156
    %v523 = vmul.f32 %v521, %v521
    %v524 = vmul.f32 %v522, %v522
    %525 = vadd.xlane.f32.xlu0 %v523
    %v526 = vpop.xlane.xlu0 %525
    %527 = vadd.xlane.f32.xlu0 %v524
    %v528 = vpop.xlane.xlu0 %527
    %v529 = vmul.f32 %v526, 0.03125
    %v530 = vmul.f32 %v528, 0.03125
    %v531 = vadd.f32 %v529, 1e-05
    %v532 = vadd.f32 %v530, 1e-05
    %v533 = vrsqrt.pop %v531
    %v534 = vmul.f32 %v533, %v531
    %v535 = vmul.f32 %v534, %v533
    %v536 = vmul.f32 0.5, %v535
    %v537 = vsub.f32 1.5, %v536
    %v538 = vmul.f32 %v533, %v537
    %vm539 = vweird.f32 %v531
    %vm540 = vweird.f32 %v533
    %vm541 = vmor %vm539, %vm540
    %v542 = vsel %vm541, %v533, %v538
    %v543 = vrsqrt.pop %v532
    %v544 = vmul.f32 %v543, %v532
    %v545 = vmul.f32 %v544, %v543
    %v546 = vmul.f32 0.5, %v545
    %v547 = vsub.f32 1.5, %v546
    %v548 = vmul.f32 %v543, %v547
    %vm549 = vweird.f32 %v532
    %vm550 = vweird.f32 %v543
    %vm551 = vmor %vm549, %vm550
    %v552 = vsel %vm551, %v543, %v548
    %v553 = vmul.f32 %v521, %v542
    %v554 = vmul.f32 %v522, %v552
    %v556 = vperm.slane %v472, 0
    %v558 = vmul.f32 %v553, %v556
    %v559 = vmul.f32 %v554, %v556
    %v561 = vperm.slane %v474, 0
    %v563 = vadd.f32 %v558, %v561
    %v564 = vadd.f32 %v559, %v561
    %v565 = vpack.c.bf16 %v564, %v563
    %v567 = vperm.slane %v493, 0
    %v585 = vunpack.c.l.b16 %v476
    %v586 = vunpack.c.l.b16 %v477
    %v587 = vunpack.c.l.b16 %v478
    %v588 = vunpack.c.l.b16 %v479
    %v589 = vunpack.c.l.b16 %v480
    %v590 = vunpack.c.l.b16 %v481
    %v591 = vunpack.c.l.b16 %v482
    %v592 = vunpack.c.l.b16 %v483
    %v593 = vunpack.c.l.b16 %v484
    %v594 = vunpack.c.l.b16 %v485
    %v595 = vunpack.c.l.b16 %v486
    %v596 = vunpack.c.l.b16 %v487
    %v597 = vunpack.c.l.b16 %v488
    %v598 = vunpack.c.l.b16 %v489
    %v599 = vunpack.c.l.b16 %v490
    %v600 = vunpack.c.l.b16 %v491
    %v601 = vpack.c.b16 %v586, %v585
    %v602 = vpack.c.b16 %v588, %v587
    %v603 = vpack.c.b16 %v590, %v589
    %v604 = vpack.c.b16 %v592, %v591
    %v605 = vpack.c.b16 %v594, %v593
    %v606 = vpack.c.b16 %v596, %v595
    %v607 = vpack.c.b16 %v598, %v597
    %v608 = vpack.c.b16 %v600, %v599
    %617 = vmatpush.bf16.msra.mxu0 %v608
    %618 = vmatpush.bf16.msra.mxu0 %v607
    %619 = vmatpush.bf16.msra.mxu0 %v606
    %620 = vmatpush.bf16.msra.mxu0 %v605
    %621 = vmatpush.bf16.msra.mxu0 %v604
    %622 = vmatpush.bf16.msra.mxu0 %v603
    %623 = vmatpush.bf16.msra.mxu0 %v602
    %624 = vmatpush.bf16.msra.mxu0 %v601
    %625 = vmatmul.bf16.gmra.mxu0 %v565
    %v626 = vpop.f32.mrf.mxu0
    %v627 = vadd.f32 %v567, %v626
    %v628 = vpop.f32.mrf.mxu0
    %v629 = vadd.f32 %v567, %v628
    %630 = vdwg.mxu0
    %v631 = vmax.f32 %v627, 0.0
    %v632 = vmax.f32 %v629, 0.0
    %v633 = vpack.c.bf16 %v632, %v631
    %v635 = vperm.slane %v512, 0
    %v653 = vunpack.c.l.b16 %v495
    %v654 = vunpack.c.l.b16 %v496
    %v655 = vunpack.c.l.b16 %v497
    %v656 = vunpack.c.l.b16 %v498
    %v657 = vunpack.c.l.b16 %v499
    %v658 = vunpack.c.l.b16 %v500
    %v659 = vunpack.c.l.b16 %v501
    %v660 = vunpack.c.l.b16 %v502
    %v661 = vunpack.c.l.b16 %v503
    %v662 = vunpack.c.l.b16 %v504
    %v663 = vunpack.c.l.b16 %v505
    %v664 = vunpack.c.l.b16 %v506
    %v665 = vunpack.c.l.b16 %v507
    %v666 = vunpack.c.l.b16 %v508
    %v667 = vunpack.c.l.b16 %v509
    %v668 = vunpack.c.l.b16 %v510
    %v669 = vpack.c.b16 %v654, %v653
    %v670 = vpack.c.b16 %v656, %v655
    %v671 = vpack.c.b16 %v658, %v657
    %v672 = vpack.c.b16 %v660, %v659
    %v673 = vpack.c.b16 %v662, %v661
    %v674 = vpack.c.b16 %v664, %v663
    %v675 = vpack.c.b16 %v666, %v665
    %v676 = vpack.c.b16 %v668, %v667
    %685 = vmatpush.bf16.msra.mxu0 %v676
    %686 = vmatpush.bf16.msra.mxu0 %v675
    %687 = vmatpush.bf16.msra.mxu0 %v674
    %688 = vmatpush.bf16.msra.mxu0 %v673
    %689 = vmatpush.bf16.msra.mxu0 %v672
    %690 = vmatpush.bf16.msra.mxu0 %v671
    %691 = vmatpush.bf16.msra.mxu0 %v670
    %692 = vmatpush.bf16.msra.mxu0 %v669
    %693 = vmatmul.bf16.gmra.mxu0 %v633
    %v694 = vpop.f32.mrf.mxu0
    %v695 = vadd.f32 %v635, %v694
    %v696 = vpop.f32.mrf.mxu0
    %v697 = vadd.f32 %v635, %v696
    %698 = vdwg.mxu0
    %v699 = vadd.f32 %v469, %v695
    %v700 = vadd.f32 %v470, %v697
    %v701 = vld [vmem:[%s9] sm:$0x1]
    %v702 = vld [vmem:[%s10] sm:$0x1]
    %703 = vadd.xlane.f32.xlu0 %v699
    %v704 = vpop.xlane.xlu0 %703
    %705 = vadd.xlane.f32.xlu0 %v700
    %v706 = vpop.xlane.xlu0 %705
    %v707 = vmul.f32 %v704, 0.03125
    %v708 = vmul.f32 %v706, 0.03125
    %v709 = vsub.f32 %v699, %v707
    %v710 = vsub.f32 %v700, %v708
    %v711 = vmul.f32 %v709, %v156
    %v712 = vmul.f32 %v710, %v156
    %v713 = vmul.f32 %v711, %v711
    %v714 = vmul.f32 %v712, %v712
    %715 = vadd.xlane.f32.xlu0 %v713
    %v716 = vpop.xlane.xlu0 %715
    %717 = vadd.xlane.f32.xlu0 %v714
    %v718 = vpop.xlane.xlu0 %717
    %v719 = vmul.f32 %v716, 0.03125
    %v720 = vmul.f32 %v718, 0.03125
    %v721 = vadd.f32 %v719, 1e-05
    %v722 = vadd.f32 %v720, 1e-05
    %v723 = vrsqrt.pop %v721
    %v724 = vmul.f32 %v723, %v721
    %v725 = vmul.f32 %v724, %v723
    %v726 = vmul.f32 0.5, %v725
    %v727 = vsub.f32 1.5, %v726
    %v728 = vmul.f32 %v723, %v727
    %vm729 = vweird.f32 %v721
    %vm730 = vweird.f32 %v723
    %vm731 = vmor %vm729, %vm730
    %v732 = vsel %vm731, %v723, %v728
    %v733 = vrsqrt.pop %v722
    %v734 = vmul.f32 %v733, %v722
    %v735 = vmul.f32 %v734, %v733
    %v736 = vmul.f32 0.5, %v735
    %v737 = vsub.f32 1.5, %v736
    %v738 = vmul.f32 %v733, %v737
    %vm739 = vweird.f32 %v722
    %vm740 = vweird.f32 %v733
    %vm741 = vmor %vm739, %vm740
    %v742 = vsel %vm741, %v733, %v738
    %v743 = vmul.f32 %v711, %v732
    %v744 = vmul.f32 %v712, %v742
    %v746 = vperm.slane %v701, 0
    %v748 = vmul.f32 %v743, %v746
    %v749 = vmul.f32 %v744, %v746
    %v751 = vperm.slane %v702, 0
    %v753 = vadd.f32 %v748, %v751
    %v754 = vadd.f32 %v749, %v751
    %v755 = vpack.c.bf16 %v754, %v753
    %v756 = vld [vmem:[#allocation13] sm:$0xf]
    %v757 = vld [vmem:[#allocation13 + $0x4] sm:$0xf]
    %v758 = vld [vmem:[#allocation13 + $0x8] sm:$0xf]
    %v759 = vld [vmem:[#allocation13 + $0xc] sm:$0xf]
    %v760 = vld [vmem:[#allocation13 + $0x10] sm:$0xf]
    %v761 = vld [vmem:[#allocation13 + $0x14] sm:$0xf]
    %v762 = vld [vmem:[#allocation13 + $0x18] sm:$0xf]
    %v763 = vld [vmem:[#allocation13 + $0x1c] sm:$0xf]
    %v764 = vld [vmem:[#allocation13 + $0x20] sm:$0xf]
    %v765 = vld [vmem:[#allocation13 + $0x24] sm:$0xf]
    %v766 = vld [vmem:[#allocation13 + $0x28] sm:$0xf]
    %v767 = vld [vmem:[#allocation13 + $0x2c] sm:$0xf]
    %v768 = vld [vmem:[#allocation13 + $0x30] sm:$0xf]
    %v769 = vld [vmem:[#allocation13 + $0x34] sm:$0xf]
    %v770 = vld [vmem:[#allocation13 + $0x38] sm:$0xf]
    %v771 = vld [vmem:[#allocation13 + $0x3c] sm:$0xf]
    %v772 = vld [vmem:[%s12] sm:$0x1]
    %v774 = vperm.slane %v772, 0
    %v792 = vunpack.c.l.b16 %v756
    %v793 = vunpack.c.l.b16 %v757
    %v794 = vunpack.c.l.b16 %v758
    %v795 = vunpack.c.l.b16 %v759
    %v796 = vunpack.c.l.b16 %v760
    %v797 = vunpack.c.l.b16 %v761
    %v798 = vunpack.c.l.b16 %v762
    %v799 = vunpack.c.l.b16 %v763
    %v800 = vunpack.c.l.b16 %v764
    %v801 = vunpack.c.l.b16 %v765
    %v802 = vunpack.c.l.b16 %v766
    %v803 = vunpack.c.l.b16 %v767
    %v804 = vunpack.c.l.b16 %v768
    %v805 = vunpack.c.l.b16 %v769
    %v806 = vunpack.c.l.b16 %v770
    %v807 = vunpack.c.l.b16 %v771
    %v808 = vpack.c.b16 %v793, %v792
    %v809 = vpack.c.b16 %v795, %v794
    %v810 = vpack.c.b16 %v797, %v796
    %v811 = vpack.c.b16 %v799, %v798
    %v812 = vpack.c.b16 %v801, %v800
    %v813 = vpack.c.b16 %v803, %v802
    %v814 = vpack.c.b16 %v805, %v804
    %v815 = vpack.c.b16 %v807, %v806
    %824 = vmatpush.bf16.msra.mxu0 %v815
    %825 = vmatpush.bf16.msra.mxu0 %v814
    %826 = vmatpush.bf16.msra.mxu0 %v813
    %827 = vmatpush.bf16.msra.mxu0 %v812
    %828 = vmatpush.bf16.msra.mxu0 %v811
    %829 = vmatpush.bf16.msra.mxu0 %v810
    %830 = vmatpush.bf16.msra.mxu0 %v809
    %831 = vmatpush.bf16.msra.mxu0 %v808
    %832 = vmatmul.bf16.gmra.mxu0 %v755
    %v833 = vpop.f32.mrf.mxu0
    %v834 = vadd.f32 %v774, %v833
    %v835 = vpop.f32.mrf.mxu0
    %v836 = vadd.f32 %v774, %v835
    %837 = vdwg.mxu0
    %838 = vst [vmem:[#allocation14] sm:$0xff] %v834
    %839 = vst [vmem:[#allocation14 + $0x8] sm:$0xff] %v836
    // Predicated region
    $region82: #{tpu_custom_call.1} parent=1 // pred_check
      _
    $region83: #{tpu_custom_call.1} parent=1 // pred_check_branch
      %841 = sbr.rel (0) target = $region85
    $region84: #{tpu_custom_call.1} parent=1 // pred_region
      %843 = vsyncadd [#allocation4], 0
      %s844 = sshll.u32 [#allocation14], 4
      %s845 = int_to_ptr.vmem [resolvable:$true] %s844
      %s846 = sshll.u32 %s13, 4
      %s847 = int_to_ptr.hbm [resolvable:$true] %s846
      %852 = dma.vmem_to_hbm [thread:$0]  %s845, 256, %s847, [#allocation4], 128, 128, 8
    $region85: #{tpu_custom_call.1} parent=1 // pred_fallthru
      _
    // Predicated region
    $region86: #{tpu_custom_call.1} parent=1 // pred_check
      _
    $region87: #{tpu_custom_call.1} parent=1 // pred_check_branch
      %854 = sbr.rel (0) target = $region89
    $region88: #{tpu_custom_call.1} parent=1 // pred_region
      %856 = dma.done [#allocation4], 256
    $region89: #{tpu_custom_call.1} parent=1 // pred_fallthru
      _
    %857 = vsyncpa [#allocation3], 1
    %858 = vsyncpa [#allocation6], 1
    %859 = vsyncpa [#allocation9], 1
    %860 = vsyncpa [#allocation12], 1
    %861 = vsyncpa [#allocation4], 1

// kernel: tpu_custom_call.1
$region0: #{tpu_custom_call.1}
  #allocation0 [shape = 'u32[]', space=smem, size = 0x4, offset = 0x4, fixed_abs, tag = 'smem constant byte address 0x4 - core index']
  #allocation1 [shape = 'u32[72,128]{1,0:T(1,128)}', space=vmem, size = 0x9000, scoped, tag = 'internal scratch']
  %s0 = inlined_call_operand.hbm [shape: bf16[16,128], index: 0, kind: input, shape index: {}]
  %s1 = inlined_call_operand.hbm [shape: bf16[128,128], index: 1, kind: input, shape index: {}]
  %s2 = inlined_call_operand.hbm [shape: f32[1,128], index: 2, kind: input, shape index: {}]
  %s3 = inlined_call_operand.vmem [shape: f32[2,1,128], index: 3, kind: input, shape index: {}]
  %s4 = inlined_call_operand.hbm [shape: f32[2,1,128], index: 4, kind: input, shape index: {}]
  %s5 = inlined_call_operand.hbm [shape: bf16[2,128,128], index: 5, kind: input, shape index: {}]
  %s6 = inlined_call_operand.vmem [shape: f32[2,1,128], index: 6, kind: input, shape index: {}]
  %s7 = inlined_call_operand.hbm [shape: bf16[2,128,128], index: 7, kind: input, shape index: {}]
  %s8 = inlined_call_operand.vmem [shape: f32[2,1,128], index: 8, kind: input, shape index: {}]
  %s9 = inlined_call_operand.vmem [shape: f32[1,128], index: 9, kind: input, shape index: {}]
  %s10 = inlined_call_operand.vmem [shape: f32[1,128], index: 10, kind: input, shape index: {}]
  %s11 = inlined_call_operand.hbm [shape: bf16[128,128], index: 11, kind: input, shape index: {}]
  %s12 = inlined_call_operand.vmem [shape: f32[1,128], index: 12, kind: input, shape index: {}]
  %s13 = inlined_call_operand.hbm [shape: f32[16,128], index: 13, kind: output, shape index: {}]
  %s14 = sld [smem:[#allocation0]]
  $region90: #{tpu_custom_call.1} parent=0
    _
  %s16 = ssub.s32 1, %s14
  %s17 = scalar_select 0, %s16, %s14
  $region1: #{tpu_custom_call.1} parent=0
    #allocation2 [shape = 'u8[4096]{0}', space=vmem, size = 0x1000, scoped, tag = 'input window, operand 0, single buffered']
    #allocation3 [shape = 's32[1]{0}', space=sflag, size = 0x4, scoped, tag = 'scoped memory for tpu_custom_call.1']
    #allocation4 [shape = 's32[1]{0}', space=sflag, size = 0x4, scoped, tag = 'scoped memory for tpu_custom_call.1']
    #allocation5 [shape = 'u8[32768]{0}', space=vmem, size = 0x8000, scoped, tag = 'input window, operand 1, single buffered']
    #allocation6 [shape = 's32[1]{0}', space=sflag, size = 0x4, scoped, tag = 'scoped memory for tpu_custom_call.1']
    #allocation7 [shape = 'u8[512]{0}', space=vmem, size = 0x400, scoped, tag = 'input window, operand 2, single buffered']
    #allocation8 [shape = 'u8[1024]{0}', space=vmem, size = 0x400, scoped, tag = 'input window, operand 4, single buffered']
    #allocation9 [shape = 's32[1]{0}', space=sflag, size = 0x4, scoped, tag = 'scoped memory for tpu_custom_call.1']
    #allocation10 [shape = 'u8[65536]{0}', space=vmem, size = 0x10000, scoped, tag = 'input window, operand 5, single buffered']
    #allocation11 [shape = 'u8[65536]{0}', space=vmem, size = 0x10000, scoped, tag = 'input window, operand 7, single buffered']
    #allocation12 [shape = 's32[1]{0}', space=sflag, size = 0x4, scoped, tag = 'scoped memory for tpu_custom_call.1']
    #allocation13 [shape = 'u8[32768]{0}', space=vmem, size = 0x8000, scoped, tag = 'input window, operand 11, single buffered']
    #allocation14 [shape = 'u8[8192]{0}', space=vmem, size = 0x2000, scoped, tag = 'output window, operand 0, single buffered']
    %18 = vsyncpa [#allocation3], 0
    %19 = vsyncpa [#allocation6], 0
    %20 = vsyncpa [#allocation9], 0
    %21 = vsyncpa [#allocation12], 0
    %22 = vsyncpa [#allocation4], 0
    // Predicated region
    $region2: #{tpu_custom_call.1} parent=1 // pred_check
      _
    $region3: #{tpu_custom_call.1} parent=1 // pred_check_branch
      %24 = sbr.rel (0) target = $region5
    $region4: #{tpu_custom_call.1} parent=1 // pred_region
      %26 = vsyncadd [#allocation3], 0
      %s27 = sshll.u32 %s0, 4
      %s28 = int_to_ptr.hbm [resolvable:$true] %s27
      %s29 = sshll.u32 [#allocation2], 4
      %s30 = int_to_ptr.vmem [resolvable:$true] %s29
      %35 = dma.hbm_to_vmem [thread:$0]  %s28, 128, %s30, [#allocation3], 64, 64, 4
    $region5: #{tpu_custom_call.1} parent=1 // pred_fallthru
      _
    // Predicated region
    $region6: #{tpu_custom_call.1} parent=1 // pred_check
      _
    $region7: #{tpu_custom_call.1} parent=1 // pred_check_branch
      %37 = sbr.rel (0) target = $region9
    $region8: #{tpu_custom_call.1} parent=1 // pred_region
      %39 = vsyncadd [#allocation6], 0
      %s40 = sshll.u32 %s1, 4
      %s41 = int_to_ptr.hbm [resolvable:$true] %s40
      %s42 = sshll.u32 [#allocation5], 4
      %s43 = int_to_ptr.vmem [resolvable:$true] %s42
      %48 = dma.hbm_to_vmem [thread:$0]  %s41, 1024, %s43, [#allocation6], 64, 64, 4
    $region9: #{tpu_custom_call.1} parent=1 // pred_fallthru
      _
    // Predicated region
    $region10: #{tpu_custom_call.1} parent=1 // pred_check
      _
    $region11: #{tpu_custom_call.1} parent=1 // pred_check_branch
      %50 = sbr.rel (0) target = $region13
    $region12: #{tpu_custom_call.1} parent=1 // pred_region
      %52 = vsyncadd [#allocation6], 0
      %s54 = sshll.u32 %s2, 4
      %s55 = int_to_ptr.hbm [resolvable:$true] %s54
      %s56 = sshll.u32 [#allocation7], 4
      %s57 = int_to_ptr.vmem [resolvable:$true] %s56
      %59 = dma.hbm_to_vmem [thread:$0]  %s55, 16, %s57, [#allocation6]
    $region13: #{tpu_custom_call.1} parent=1 // pred_fallthru
      _
    // Predicated region
    $region14: #{tpu_custom_call.1} parent=1 // pred_check
      _
    $region15: #{tpu_custom_call.1} parent=1 // pred_check_branch
      %61 = sbr.rel (0) target = $region17
    $region16: #{tpu_custom_call.1} parent=1 // pred_region
      _
    $region17: #{tpu_custom_call.1} parent=1 // pred_fallthru
      _
    // Predicated region
    $region18: #{tpu_custom_call.1} parent=1 // pred_check
      _
    $region19: #{tpu_custom_call.1} parent=1 // pred_check_branch
      %63 = sbr.rel (0) target = $region21
    $region20: #{tpu_custom_call.1} parent=1 // pred_region
      %65 = vsyncadd [#allocation9], 0
      %s66 = sshll.u32 %s4, 4
      %s67 = int_to_ptr.hbm [resolvable:$true] %s66
      %s68 = sshll.u32 [#allocation8], 4
      %s69 = int_to_ptr.vmem [resolvable:$true] %s68
      %74 = dma.hbm_to_vmem [thread:$0]  %s67, 32, %s69, [#allocation9], 16, 16, 1
    $region21: #{tpu_custom_call.1} parent=1 // pred_fallthru
      _
    // Predicated region
    $region22: #{tpu_custom_call.1} parent=1 // pred_check
      _
    $region23: #{tpu_custom_call.1} parent=1 // pred_check_branch
      %76 = sbr.rel (0) target = $region25
    $region24: #{tpu_custom_call.1} parent=1 // pred_region
      %78 = vsyncadd [#allocation9], 0
      %s79 = sshll.u32 %s5, 4
      %s80 = int_to_ptr.hbm [resolvable:$true] %s79
      %s81 = sshll.u32 [#allocation10], 4
      %s82 = int_to_ptr.vmem [resolvable:$true] %s81
      %87 = dma.hbm_to_vmem [thread:$0]  %s80, 2048, %s82, [#allocation9], 64, 64, 4
    $region25: #{tpu_custom_call.1} parent=1 // pred_fallthru
      _
    // Predicated region
    $region26: #{tpu_custom_call.1} parent=1 // pred_check
      _
    $region27: #{tpu_custom_call.1} parent=1 // pred_check_branch
      %89 = sbr.rel (0) target = $region29
    $region28: #{tpu_custom_call.1} parent=1 // pred_region
      _
    $region29: #{tpu_custom_call.1} parent=1 // pred_fallthru
      _
    // Predicated region
    $region30: #{tpu_custom_call.1} parent=1 // pred_check
      _
    $region31: #{tpu_custom_call.1} parent=1 // pred_check_branch
      %91 = sbr.rel (0) target = $region33
    $region32: #{tpu_custom_call.1} parent=1 // pred_region
      %93 = vsyncadd [#allocation12], 0
      %s94 = sshll.u32 %s7, 4
      %s95 = int_to_ptr.hbm [resolvable:$true] %s94
      %s96 = sshll.u32 [#allocation11], 4
      %s97 = int_to_ptr.vmem [resolvable:$true] %s96
      %102 = dma.hbm_to_vmem [thread:$0]  %s95, 2048, %s97, [#allocation12], 64, 64, 4
    $region33: #{tpu_custom_call.1} parent=1 // pred_fallthru
      _
    // Predicated region
    $region34: #{tpu_custom_call.1} parent=1 // pred_check
      _
    $region35: #{tpu_custom_call.1} parent=1 // pred_check_branch
      %104 = sbr.rel (0) target = $region37
    $region36: #{tpu_custom_call.1} parent=1 // pred_region
      _
    $region37: #{tpu_custom_call.1} parent=1 // pred_fallthru
      _
    // Predicated region
    $region38: #{tpu_custom_call.1} parent=1 // pred_check
      _
    $region39: #{tpu_custom_call.1} parent=1 // pred_check_branch
      %106 = sbr.rel (0) target = $region41
    $region40: #{tpu_custom_call.1} parent=1 // pred_region
      _
    $region41: #{tpu_custom_call.1} parent=1 // pred_fallthru
      _
    // Predicated region
    $region42: #{tpu_custom_call.1} parent=1 // pred_check
      _
    $region43: #{tpu_custom_call.1} parent=1 // pred_check_branch
      %108 = sbr.rel (0) target = $region45
    $region44: #{tpu_custom_call.1} parent=1 // pred_region
      _
    $region45: #{tpu_custom_call.1} parent=1 // pred_fallthru
      _
    // Predicated region
    $region46: #{tpu_custom_call.1} parent=1 // pred_check
      _
    $region47: #{tpu_custom_call.1} parent=1 // pred_check_branch
      %110 = sbr.rel (0) target = $region49
    $region48: #{tpu_custom_call.1} parent=1 // pred_region
      %112 = vsyncadd [#allocation12], 0
      %s113 = sshll.u32 %s11, 4
      %s114 = int_to_ptr.hbm [resolvable:$true] %s113
      %s115 = sshll.u32 [#allocation13], 4
      %s116 = int_to_ptr.vmem [resolvable:$true] %s115
      %121 = dma.hbm_to_vmem [thread:$0]  %s114, 1024, %s116, [#allocation12], 64, 64, 4
    $region49: #{tpu_custom_call.1} parent=1 // pred_fallthru
      _
    // Predicated region
    $region50: #{tpu_custom_call.1} parent=1 // pred_check
      _
    $region51: #{tpu_custom_call.1} parent=1 // pred_check_branch
      %123 = sbr.rel (0) target = $region53
    $region52: #{tpu_custom_call.1} parent=1 // pred_region
      _
    $region53: #{tpu_custom_call.1} parent=1 // pred_fallthru
      _
    // Predicated region
    $region54: #{tpu_custom_call.1} parent=1 // pred_check
      _
    $region55: #{tpu_custom_call.1} parent=1 // pred_check_branch
      %125 = sbr.rel (0) target = $region57
    $region56: #{tpu_custom_call.1} parent=1 // pred_region
      %127 = dma.done [#allocation3], 128
    $region57: #{tpu_custom_call.1} parent=1 // pred_fallthru
      _
    // Predicated region
    $region58: #{tpu_custom_call.1} parent=1 // pred_check
      _
    $region59: #{tpu_custom_call.1} parent=1 // pred_check_branch
      %129 = sbr.rel (0) target = $region61
    $region60: #{tpu_custom_call.1} parent=1 // pred_region
      %131 = dma.done [#allocation6], 1024
    $region61: #{tpu_custom_call.1} parent=1 // pred_fallthru
      _
    // Predicated region
    $region62: #{tpu_custom_call.1} parent=1 // pred_check
      _
    $region63: #{tpu_custom_call.1} parent=1 // pred_check_branch
      %133 = sbr.rel (0) target = $region65
    $region64: #{tpu_custom_call.1} parent=1 // pred_region
      %135 = dma.done [#allocation6], 16
    $region65: #{tpu_custom_call.1} parent=1 // pred_fallthru
      _
    // Predicated region
    $region66: #{tpu_custom_call.1} parent=1 // pred_check
      _
    $region67: #{tpu_custom_call.1} parent=1 // pred_check_branch
      %137 = sbr.rel (0) target = $region69
    $region68: #{tpu_custom_call.1} parent=1 // pred_region
      %139 = dma.done [#allocation9], 32
    $region69: #{tpu_custom_call.1} parent=1 // pred_fallthru
      _
    // Predicated region
    $region70: #{tpu_custom_call.1} parent=1 // pred_check
      _
    $region71: #{tpu_custom_call.1} parent=1 // pred_check_branch
      %141 = sbr.rel (0) target = $region73
    $region72: #{tpu_custom_call.1} parent=1 // pred_region
      %143 = dma.done [#allocation9], 2048
    $region73: #{tpu_custom_call.1} parent=1 // pred_fallthru
      _
    // Predicated region
    $region74: #{tpu_custom_call.1} parent=1 // pred_check
      _
    $region75: #{tpu_custom_call.1} parent=1 // pred_check_branch
      %145 = sbr.rel (0) target = $region77
    $region76: #{tpu_custom_call.1} parent=1 // pred_region
      %147 = dma.done [#allocation12], 2048
    $region77: #{tpu_custom_call.1} parent=1 // pred_fallthru
      _
    // Predicated region
    $region78: #{tpu_custom_call.1} parent=1 // pred_check
      _
    $region79: #{tpu_custom_call.1} parent=1 // pred_check_branch
      %149 = sbr.rel (0) target = $region81
    $region80: #{tpu_custom_call.1} parent=1 // pred_region
      %151 = dma.done [#allocation12], 1024
    $region81: #{tpu_custom_call.1} parent=1 // pred_fallthru
      _
    %v152 = vlaneseq
    %v153 = vand.u32 %v152, 127
    %vm154 = vcmp.lt.s32.totalorder %v153, 32
    %v155 = vsel %vm154, 1, 0
    %v156 = vcvt.s32.f32 %v155
    %v157 = vld [vmem:[#allocation2] sm:$0xf]
    %v158 = vld [vmem:[#allocation2 + $0x4] sm:$0xf]
    %v159 = vld [vmem:[#allocation5] sm:$0xf]
    %v160 = vld [vmem:[#allocation5 + $0x4] sm:$0xf]
    %v161 = vld [vmem:[#allocation5 + $0x8] sm:$0xf]
    %v162 = vld [vmem:[#allocation5 + $0xc] sm:$0xf]
    %v163 = vld [vmem:[#allocation5 + $0x10] sm:$0xf]
    %v164 = vld [vmem:[#allocation5 + $0x14] sm:$0xf]
    %v165 = vld [vmem:[#allocation5 + $0x18] sm:$0xf]
    %v166 = vld [vmem:[#allocation5 + $0x1c] sm:$0xf]
    %v167 = vld [vmem:[#allocation5 + $0x20] sm:$0xf]
    %v168 = vld [vmem:[#allocation5 + $0x24] sm:$0xf]
    %v169 = vld [vmem:[#allocation5 + $0x28] sm:$0xf]
    %v170 = vld [vmem:[#allocation5 + $0x2c] sm:$0xf]
    %v171 = vld [vmem:[#allocation5 + $0x30] sm:$0xf]
    %v172 = vld [vmem:[#allocation5 + $0x34] sm:$0xf]
    %v173 = vld [vmem:[#allocation5 + $0x38] sm:$0xf]
    %v174 = vld [vmem:[#allocation5 + $0x3c] sm:$0xf]
    %v175 = vld [vmem:[#allocation7] sm:$0x1]
    %v177 = vperm.slane %v175, 0
    %v181 = vunpack.c.l.b16 %v157
    %v182 = vunpack.c.l.b16 %v158
    %v183 = vpack.c.b16 %v182, %v181
    %v201 = vunpack.c.l.b16 %v159
    %v202 = vunpack.c.l.b16 %v160
    %v203 = vunpack.c.l.b16 %v161
    %v204 = vunpack.c.l.b16 %v162
    %v205 = vunpack.c.l.b16 %v163
    %v206 = vunpack.c.l.b16 %v164
    %v207 = vunpack.c.l.b16 %v165
    %v208 = vunpack.c.l.b16 %v166
    %v209 = vunpack.c.l.b16 %v167
    %v210 = vunpack.c.l.b16 %v168
    %v211 = vunpack.c.l.b16 %v169
    %v212 = vunpack.c.l.b16 %v170
    %v213 = vunpack.c.l.b16 %v171
    %v214 = vunpack.c.l.b16 %v172
    %v215 = vunpack.c.l.b16 %v173
    %v216 = vunpack.c.l.b16 %v174
    %v217 = vpack.c.b16 %v202, %v201
    %v218 = vpack.c.b16 %v204, %v203
    %v219 = vpack.c.b16 %v206, %v205
    %v220 = vpack.c.b16 %v208, %v207
    %v221 = vpack.c.b16 %v210, %v209
    %v222 = vpack.c.b16 %v212, %v211
    %v223 = vpack.c.b16 %v214, %v213
    %v224 = vpack.c.b16 %v216, %v215
    %233 = vmatpush.bf16.msra.mxu0 %v224
    %234 = vmatpush.bf16.msra.mxu0 %v223
    %235 = vmatpush.bf16.msra.mxu0 %v222
    %236 = vmatpush.bf16.msra.mxu0 %v221
    %237 = vmatpush.bf16.msra.mxu0 %v220
    %238 = vmatpush.bf16.msra.mxu0 %v219
    %239 = vmatpush.bf16.msra.mxu0 %v218
    %240 = vmatpush.bf16.msra.mxu0 %v217
    %241 = vmatmul.bf16.gmra.mxu0 %v183
    %v242 = vpop.f32.mrf.mxu0
    %v243 = vadd.f32 %v177, %v242
    %v244 = vpop.f32.mrf.mxu0
    %v245 = vadd.f32 %v177, %v244
    %246 = vdwg.mxu0
    %v247 = vld [vmem:[%s3] sm:$0x1]
    %v248 = vld [vmem:[#allocation8] sm:$0x1]
    %v249 = vld [vmem:[#allocation10] sm:$0xf]
    %v250 = vld [vmem:[#allocation10 + $0x4] sm:$0xf]
    %v251 = vld [vmem:[#allocation10 + $0x8] sm:$0xf]
    %v252 = vld [vmem:[#allocation10 + $0xc] sm:$0xf]
    %v253 = vld [vmem:[#allocation10 + $0x10] sm:$0xf]
    %v254 = vld [vmem:[#allocation10 + $0x14] sm:$0xf]
    %v255 = vld [vmem:[#allocation10 + $0x18] sm:$0xf]
    %v256 = vld [vmem:[#allocation10 + $0x1c] sm:$0xf]
    %v257 = vld [vmem:[#allocation10 + $0x20] sm:$0xf]
    %v258 = vld [vmem:[#allocation10 + $0x24] sm:$0xf]
    %v259 = vld [vmem:[#allocation10 + $0x28] sm:$0xf]
    %v260 = vld [vmem:[#allocation10 + $0x2c] sm:$0xf]
    %v261 = vld [vmem:[#allocation10 + $0x30] sm:$0xf]
    %v262 = vld [vmem:[#allocation10 + $0x34] sm:$0xf]
    %v263 = vld [vmem:[#allocation10 + $0x38] sm:$0xf]
    %v264 = vld [vmem:[#allocation10 + $0x3c] sm:$0xf]
    %v265 = vld [vmem:[%s6] sm:$0x1]
    %v266 = vld [vmem:[#allocation11] sm:$0xf]
    %v267 = vld [vmem:[#allocation11 + $0x4] sm:$0xf]
    %v268 = vld [vmem:[#allocation11 + $0x8] sm:$0xf]
    %v269 = vld [vmem:[#allocation11 + $0xc] sm:$0xf]
    %v270 = vld [vmem:[#allocation11 + $0x10] sm:$0xf]
    %v271 = vld [vmem:[#allocation11 + $0x14] sm:$0xf]
    %v272 = vld [vmem:[#allocation11 + $0x18] sm:$0xf]
    %v273 = vld [vmem:[#allocation11 + $0x1c] sm:$0xf]
    %v274 = vld [vmem:[#allocation11 + $0x20] sm:$0xf]
    %v275 = vld [vmem:[#allocation11 + $0x24] sm:$0xf]
    %v276 = vld [vmem:[#allocation11 + $0x28] sm:$0xf]
    %v277 = vld [vmem:[#allocation11 + $0x2c] sm:$0xf]
    %v278 = vld [vmem:[#allocation11 + $0x30] sm:$0xf]
    %v279 = vld [vmem:[#allocation11 + $0x34] sm:$0xf]
    %v280 = vld [vmem:[#allocation11 + $0x38] sm:$0xf]
    %v281 = vld [vmem:[#allocation11 + $0x3c] sm:$0xf]
    %v282 = vld [vmem:[%s8] sm:$0x1]
    %283 = vadd.xlane.f32.xlu0 %v243
    %v284 = vpop.xlane.xlu0 %283
    %285 = vadd.xlane.f32.xlu0 %v245
    %v286 = vpop.xlane.xlu0 %285
    %v287 = vmul.f32 %v284, 0.03125
    %v288 = vmul.f32 %v286, 0.03125
    %v289 = vsub.f32 %v243, %v287
    %v290 = vsub.f32 %v245, %v288
    %v291 = vmul.f32 %v289, %v156
    %v292 = vmul.f32 %v290, %v156
    %v293 = vmul.f32 %v291, %v291
    %v294 = vmul.f32 %v292, %v292
    %295 = vadd.xlane.f32.xlu0 %v293
    %v296 = vpop.xlane.xlu0 %295
    %297 = vadd.xlane.f32.xlu0 %v294
    %v298 = vpop.xlane.xlu0 %297
    %v299 = vmul.f32 %v296, 0.03125
    %v300 = vmul.f32 %v298, 0.03125
    %v301 = vadd.f32 %v299, 1e-05
    %v302 = vadd.f32 %v300, 1e-05
    %v303 = vrsqrt.pop %v301
    %v304 = vmul.f32 %v303, %v301
    %v305 = vmul.f32 %v304, %v303
    %v306 = vmul.f32 0.5, %v305
    %v307 = vsub.f32 1.5, %v306
    %v308 = vmul.f32 %v303, %v307
    %vm309 = vweird.f32 %v301
    %vm310 = vweird.f32 %v303
    %vm311 = vmor %vm309, %vm310
    %v312 = vsel %vm311, %v303, %v308
    %v313 = vrsqrt.pop %v302
    %v314 = vmul.f32 %v313, %v302
    %v315 = vmul.f32 %v314, %v313
    %v316 = vmul.f32 0.5, %v315
    %v317 = vsub.f32 1.5, %v316
    %v318 = vmul.f32 %v313, %v317
    %vm319 = vweird.f32 %v302
    %vm320 = vweird.f32 %v313
    %vm321 = vmor %vm319, %vm320
    %v322 = vsel %vm321, %v313, %v318
    %v323 = vmul.f32 %v291, %v312
    %v324 = vmul.f32 %v292, %v322
    %v326 = vperm.slane %v247, 0
    %v328 = vmul.f32 %v323, %v326
    %v329 = vmul.f32 %v324, %v326
    %v331 = vperm.slane %v248, 0
    %v333 = vadd.f32 %v328, %v331
    %v334 = vadd.f32 %v329, %v331
    %v335 = vpack.c.bf16 %v334, %v333
    %v337 = vperm.slane %v265, 0
    %v355 = vunpack.c.l.b16 %v249
    %v356 = vunpack.c.l.b16 %v250
    %v357 = vunpack.c.l.b16 %v251
    %v358 = vunpack.c.l.b16 %v252
    %v359 = vunpack.c.l.b16 %v253
    %v360 = vunpack.c.l.b16 %v254
    %v361 = vunpack.c.l.b16 %v255
    %v362 = vunpack.c.l.b16 %v256
    %v363 = vunpack.c.l.b16 %v257
    %v364 = vunpack.c.l.b16 %v258
    %v365 = vunpack.c.l.b16 %v259
    %v366 = vunpack.c.l.b16 %v260
    %v367 = vunpack.c.l.b16 %v261
    %v368 = vunpack.c.l.b16 %v262
    %v369 = vunpack.c.l.b16 %v263
    %v370 = vunpack.c.l.b16 %v264
    %v371 = vpack.c.b16 %v356, %v355
    %v372 = vpack.c.b16 %v358, %v357
    %v373 = vpack.c.b16 %v360, %v359
    %v374 = vpack.c.b16 %v362, %v361
    %v375 = vpack.c.b16 %v364, %v363
    %v376 = vpack.c.b16 %v366, %v365
    %v377 = vpack.c.b16 %v368, %v367
    %v378 = vpack.c.b16 %v370, %v369
    %387 = vmatpush.bf16.msra.mxu0 %v378
    %388 = vmatpush.bf16.msra.mxu0 %v377
    %389 = vmatpush.bf16.msra.mxu0 %v376
    %390 = vmatpush.bf16.msra.mxu0 %v375
    %391 = vmatpush.bf16.msra.mxu0 %v374
    %392 = vmatpush.bf16.msra.mxu0 %v373
    %393 = vmatpush.bf16.msra.mxu0 %v372
    %394 = vmatpush.bf16.msra.mxu0 %v371
    %395 = vmatmul.bf16.gmra.mxu0 %v335
    %v396 = vpop.f32.mrf.mxu0
    %v397 = vadd.f32 %v337, %v396
    %v398 = vpop.f32.mrf.mxu0
    %v399 = vadd.f32 %v337, %v398
    %400 = vdwg.mxu0
    %v401 = vmax.f32 %v397, 0.0
    %v402 = vmax.f32 %v399, 0.0
    %v403 = vpack.c.bf16 %v402, %v401
    %v405 = vperm.slane %v282, 0
    %v423 = vunpack.c.l.b16 %v266
    %v424 = vunpack.c.l.b16 %v267
    %v425 = vunpack.c.l.b16 %v268
    %v426 = vunpack.c.l.b16 %v269
    %v427 = vunpack.c.l.b16 %v270
    %v428 = vunpack.c.l.b16 %v271
    %v429 = vunpack.c.l.b16 %v272
    %v430 = vunpack.c.l.b16 %v273
    %v431 = vunpack.c.l.b16 %v274
    %v432 = vunpack.c.l.b16 %v275
    %v433 = vunpack.c.l.b16 %v276
    %v434 = vunpack.c.l.b16 %v277
    %v435 = vunpack.c.l.b16 %v278
    %v436 = vunpack.c.l.b16 %v279
    %v437 = vunpack.c.l.b16 %v280
    %v438 = vunpack.c.l.b16 %v281
    %v439 = vpack.c.b16 %v424, %v423
    %v440 = vpack.c.b16 %v426, %v425
    %v441 = vpack.c.b16 %v428, %v427
    %v442 = vpack.c.b16 %v430, %v429
    %v443 = vpack.c.b16 %v432, %v431
    %v444 = vpack.c.b16 %v434, %v433
    %v445 = vpack.c.b16 %v436, %v435
    %v446 = vpack.c.b16 %v438, %v437
    %455 = vmatpush.bf16.msra.mxu0 %v446
    %456 = vmatpush.bf16.msra.mxu0 %v445
    %457 = vmatpush.bf16.msra.mxu0 %v444
    %458 = vmatpush.bf16.msra.mxu0 %v443
    %459 = vmatpush.bf16.msra.mxu0 %v442
    %460 = vmatpush.bf16.msra.mxu0 %v441
    %461 = vmatpush.bf16.msra.mxu0 %v440
    %462 = vmatpush.bf16.msra.mxu0 %v439
    %463 = vmatmul.bf16.gmra.mxu0 %v403
    %v464 = vpop.f32.mrf.mxu0
    %v465 = vadd.f32 %v405, %v464
    %v466 = vpop.f32.mrf.mxu0
    %v467 = vadd.f32 %v405, %v466
    %468 = vdwg.mxu0
    %v469 = vadd.f32 %v243, %v465
    %v470 = vadd.f32 %v245, %v467
    %s471 = scalar_lea.vmem %s3, 1
    %v472 = vld [vmem:[%s471] sm:$0x1]
    %s473 = scalar_lea.vmem [#allocation8], 1
    %v474 = vld [vmem:[%s473] sm:$0x1]
    %s475 = scalar_lea.vmem [#allocation10], 64
    %v476 = vld [vmem:[%s475] sm:$0xf]
    %v477 = vld [vmem:[%s475 + $0x4] sm:$0xf]
    %v478 = vld [vmem:[%s475 + $0x8] sm:$0xf]
    %v479 = vld [vmem:[%s475 + $0xc] sm:$0xf]
    %v480 = vld [vmem:[%s475 + $0x10] sm:$0xf]
    %v481 = vld [vmem:[%s475 + $0x14] sm:$0xf]
    %v482 = vld [vmem:[%s475 + $0x18] sm:$0xf]
    %v483 = vld [vmem:[%s475 + $0x1c] sm:$0xf]
    %v484 = vld [vmem:[%s475 + $0x20] sm:$0xf]
    %v485 = vld [vmem:[%s475 + $0x24] sm:$0xf]
    %v486 = vld [vmem:[%s475 + $0x28] sm:$0xf]
    %v487 = vld [vmem:[%s475 + $0x2c] sm:$0xf]
    %v488 = vld [vmem:[%s475 + $0x30] sm:$0xf]
    %v489 = vld [vmem:[%s475 + $0x34] sm:$0xf]
    %v490 = vld [vmem:[%s475 + $0x38] sm:$0xf]
    %v491 = vld [vmem:[%s475 + $0x3c] sm:$0xf]
    %s492 = scalar_lea.vmem %s6, 1
    %v493 = vld [vmem:[%s492] sm:$0x1]
    %s494 = scalar_lea.vmem [#allocation11], 64
    %v495 = vld [vmem:[%s494] sm:$0xf]
    %v496 = vld [vmem:[%s494 + $0x4] sm:$0xf]
    %v497 = vld [vmem:[%s494 + $0x8] sm:$0xf]
    %v498 = vld [vmem:[%s494 + $0xc] sm:$0xf]
    %v499 = vld [vmem:[%s494 + $0x10] sm:$0xf]
    %v500 = vld [vmem:[%s494 + $0x14] sm:$0xf]
    %v501 = vld [vmem:[%s494 + $0x18] sm:$0xf]
    %v502 = vld [vmem:[%s494 + $0x1c] sm:$0xf]
    %v503 = vld [vmem:[%s494 + $0x20] sm:$0xf]
    %v504 = vld [vmem:[%s494 + $0x24] sm:$0xf]
    %v505 = vld [vmem:[%s494 + $0x28] sm:$0xf]
    %v506 = vld [vmem:[%s494 + $0x2c] sm:$0xf]
    %v507 = vld [vmem:[%s494 + $0x30] sm:$0xf]
    %v508 = vld [vmem:[%s494 + $0x34] sm:$0xf]
    %v509 = vld [vmem:[%s494 + $0x38] sm:$0xf]
    %v510 = vld [vmem:[%s494 + $0x3c] sm:$0xf]
    %s511 = scalar_lea.vmem %s8, 1
    %v512 = vld [vmem:[%s511] sm:$0x1]
    %513 = vadd.xlane.f32.xlu0 %v469
    %v514 = vpop.xlane.xlu0 %513
    %515 = vadd.xlane.f32.xlu0 %v470
    %v516 = vpop.xlane.xlu0 %515
    %v517 = vmul.f32 %v514, 0.03125
    %v518 = vmul.f32 %v516, 0.03125
    %v519 = vsub.f32 %v469, %v517
    %v520 = vsub.f32 %v470, %v518
    %v521 = vmul.f32 %v519, %v156
    %v522 = vmul.f32 %v520, %v156
    %v523 = vmul.f32 %v521, %v521
    %v524 = vmul.f32 %v522, %v522
    %525 = vadd.xlane.f32.xlu0 %v523
    %v526 = vpop.xlane.xlu0 %525
    %527 = vadd.xlane.f32.xlu0 %v524
    %v528 = vpop.xlane.xlu0 %527
    %v529 = vmul.f32 %v526, 0.03125
    %v530 = vmul.f32 %v528, 0.03125
    %v531 = vadd.f32 %v529, 1e-05
    %v532 = vadd.f32 %v530, 1e-05
    %v533 = vrsqrt.pop %v531
    %v534 = vmul.f32 %v533, %v531
    %v535 = vmul.f32 %v534, %v533
    %v536 = vmul.f32 0.5, %v535
    %v537 = vsub.f32 1.5, %v536
    %v538 = vmul.f32 %v533, %v537
    %vm539 = vweird.f32 %v531
    %vm540 = vweird.f32 %v533
    %vm541 = vmor %vm539, %vm540
    %v542 = vsel %vm541, %v533, %v538
    %v543 = vrsqrt.pop %v532
    %v544 = vmul.f32 %v543, %v532
    %v545 = vmul.f32 %v544, %v543
    %v546 = vmul.f32 0.5, %v545
    %v547 = vsub.f32 1.5, %v546
    %v548 = vmul.f32 %v543, %v547
    %vm549 = vweird.f32 %v532
    %vm550 = vweird.f32 %v543
    %vm551 = vmor %vm549, %vm550
    %v552 = vsel %vm551, %v543, %v548
    %v553 = vmul.f32 %v521, %v542
    %v554 = vmul.f32 %v522, %v552
    %v556 = vperm.slane %v472, 0
    %v558 = vmul.f32 %v553, %v556
    %v559 = vmul.f32 %v554, %v556
    %v561 = vperm.slane %v474, 0
    %v563 = vadd.f32 %v558, %v561
    %v564 = vadd.f32 %v559, %v561
    %v565 = vpack.c.bf16 %v564, %v563
    %v567 = vperm.slane %v493, 0
    %v585 = vunpack.c.l.b16 %v476
    %v586 = vunpack.c.l.b16 %v477
    %v587 = vunpack.c.l.b16 %v478
    %v588 = vunpack.c.l.b16 %v479
    %v589 = vunpack.c.l.b16 %v480
    %v590 = vunpack.c.l.b16 %v481
    %v591 = vunpack.c.l.b16 %v482
    %v592 = vunpack.c.l.b16 %v483
    %v593 = vunpack.c.l.b16 %v484
    %v594 = vunpack.c.l.b16 %v485
    %v595 = vunpack.c.l.b16 %v486
    %v596 = vunpack.c.l.b16 %v487
    %v597 = vunpack.c.l.b16 %v488
    %v598 = vunpack.c.l.b16 %v489
    %v599 = vunpack.c.l.b16 %v490
    %v600 = vunpack.c.l.b16 %v491
    %v601 = vpack.c.b16 %v586, %v585
    %v602 = vpack.c.b16 %v588, %v587
    %v603 = vpack.c.b16 %v590, %v589
    %v604 = vpack.c.b16 %v592, %v591
    %v605 = vpack.c.b16 %v594, %v593
    %v606 = vpack.c.b16 %v596, %v595
    %v607 = vpack.c.b16 %v598, %v597
    %v608 = vpack.c.b16 %v600, %v599
    %617 = vmatpush.bf16.msra.mxu0 %v608
    %618 = vmatpush.bf16.msra.mxu0 %v607
    %619 = vmatpush.bf16.msra.mxu0 %v606
    %620 = vmatpush.bf16.msra.mxu0 %v605
    %621 = vmatpush.bf16.msra.mxu0 %v604
    %622 = vmatpush.bf16.msra.mxu0 %v603
    %623 = vmatpush.bf16.msra.mxu0 %v602
    %624 = vmatpush.bf16.msra.mxu0 %v601
    %625 = vmatmul.bf16.gmra.mxu0 %v565
    %v626 = vpop.f32.mrf.mxu0
    %v627 = vadd.f32 %v567, %v626
    %v628 = vpop.f32.mrf.mxu0
    %v629 = vadd.f32 %v567, %v628
    %630 = vdwg.mxu0
    %v631 = vmax.f32 %v627, 0.0
    %v632 = vmax.f32 %v629, 0.0
    %v633 = vpack.c.bf16 %v632, %v631
    %v635 = vperm.slane %v512, 0
    %v653 = vunpack.c.l.b16 %v495
    %v654 = vunpack.c.l.b16 %v496
    %v655 = vunpack.c.l.b16 %v497
    %v656 = vunpack.c.l.b16 %v498
    %v657 = vunpack.c.l.b16 %v499
    %v658 = vunpack.c.l.b16 %v500
    %v659 = vunpack.c.l.b16 %v501
    %v660 = vunpack.c.l.b16 %v502
    %v661 = vunpack.c.l.b16 %v503
    %v662 = vunpack.c.l.b16 %v504
    %v663 = vunpack.c.l.b16 %v505
    %v664 = vunpack.c.l.b16 %v506
    %v665 = vunpack.c.l.b16 %v507
    %v666 = vunpack.c.l.b16 %v508
    %v667 = vunpack.c.l.b16 %v509
    %v668 = vunpack.c.l.b16 %v510
    %v669 = vpack.c.b16 %v654, %v653
    %v670 = vpack.c.b16 %v656, %v655
    %v671 = vpack.c.b16 %v658, %v657
    %v672 = vpack.c.b16 %v660, %v659
    %v673 = vpack.c.b16 %v662, %v661
    %v674 = vpack.c.b16 %v664, %v663
    %v675 = vpack.c.b16 %v666, %v665
    %v676 = vpack.c.b16 %v668, %v667
    %685 = vmatpush.bf16.msra.mxu0 %v676
    %686 = vmatpush.bf16.msra.mxu0 %v675
    %687 = vmatpush.bf16.msra.mxu0 %v674
    %688 = vmatpush.bf16.msra.mxu0 %v673
    %689 = vmatpush.bf16.msra.mxu0 %v672
    %690 = vmatpush.bf16.msra.mxu0 %v671
    %691 = vmatpush.bf16.msra.mxu0 %v670
    %692 = vmatpush.bf16.msra.mxu0 %v669
    %693 = vmatmul.bf16.gmra.mxu0 %v633
    %v694 = vpop.f32.mrf.mxu0
    %v695 = vadd.f32 %v635, %v694
    %v696 = vpop.f32.mrf.mxu0
    %v697 = vadd.f32 %v635, %v696
    %698 = vdwg.mxu0
    %v699 = vadd.f32 %v469, %v695
    %v700 = vadd.f32 %v470, %v697
    %v701 = vld [vmem:[%s9] sm:$0x1]
    %v702 = vld [vmem:[%s10] sm:$0x1]
    %703 = vadd.xlane.f32.xlu0 %v699
    %v704 = vpop.xlane.xlu0 %703
    %705 = vadd.xlane.f32.xlu0 %v700
    %v706 = vpop.xlane.xlu0 %705
    %v707 = vmul.f32 %v704, 0.03125
    %v708 = vmul.f32 %v706, 0.03125
    %v709 = vsub.f32 %v699, %v707
    %v710 = vsub.f32 %v700, %v708
    %v711 = vmul.f32 %v709, %v156
    %v712 = vmul.f32 %v710, %v156
    %v713 = vmul.f32 %v711, %v711
    %v714 = vmul.f32 %v712, %v712
    %715 = vadd.xlane.f32.xlu0 %v713
    %v716 = vpop.xlane.xlu0 %715
    %717 = vadd.xlane.f32.xlu0 %v714
    %v718 = vpop.xlane.xlu0 %717
    %v719 = vmul.f32 %v716, 0.03125
    %v720 = vmul.f32 %v718, 0.03125
    %v721 = vadd.f32 %v719, 1e-05
    %v722 = vadd.f32 %v720, 1e-05
    %v723 = vrsqrt.pop %v721
    %v724 = vmul.f32 %v723, %v721
    %v725 = vmul.f32 %v724, %v723
    %v726 = vmul.f32 0.5, %v725
    %v727 = vsub.f32 1.5, %v726
    %v728 = vmul.f32 %v723, %v727
    %vm729 = vweird.f32 %v721
    %vm730 = vweird.f32 %v723
    %vm731 = vmor %vm729, %vm730
    %v732 = vsel %vm731, %v723, %v728
    %v733 = vrsqrt.pop %v722
    %v734 = vmul.f32 %v733, %v722
    %v735 = vmul.f32 %v734, %v733
    %v736 = vmul.f32 0.5, %v735
    %v737 = vsub.f32 1.5, %v736
    %v738 = vmul.f32 %v733, %v737
    %vm739 = vweird.f32 %v722
    %vm740 = vweird.f32 %v733
    %vm741 = vmor %vm739, %vm740
    %v742 = vsel %vm741, %v733, %v738
    %v743 = vmul.f32 %v711, %v732
    %v744 = vmul.f32 %v712, %v742
    %v746 = vperm.slane %v701, 0
    %v748 = vmul.f32 %v743, %v746
    %v749 = vmul.f32 %v744, %v746
    %v751 = vperm.slane %v702, 0
    %v753 = vadd.f32 %v748, %v751
    %v754 = vadd.f32 %v749, %v751
    %v755 = vpack.c.bf16 %v754, %v753
    %v756 = vld [vmem:[#allocation13] sm:$0xf]
    %v757 = vld [vmem:[#allocation13 + $0x4] sm:$0xf]
    %v758 = vld [vmem:[#allocation13 + $0x8] sm:$0xf]
    %v759 = vld [vmem:[#allocation13 + $0xc] sm:$0xf]
    %v760 = vld [vmem:[#allocation13 + $0x10] sm:$0xf]
    %v761 = vld [vmem:[#allocation13 + $0x14] sm:$0xf]
    %v762 = vld [vmem:[#allocation13 + $0x18] sm:$0xf]
    %v763 = vld [vmem:[#allocation13 + $0x1c] sm:$0xf]
    %v764 = vld [vmem:[#allocation13 + $0x20] sm:$0xf]
    %v765 = vld [vmem:[#allocation13 + $0x24] sm:$0xf]
    %v766 = vld [vmem:[#allocation13 + $0x28] sm:$0xf]
    %v767 = vld [vmem:[#allocation13 + $0x2c] sm:$0xf]
    %v768 = vld [vmem:[#allocation13 + $0x30] sm:$0xf]
    %v769 = vld [vmem:[#allocation13 + $0x34] sm:$0xf]
    %v770 = vld [vmem:[#allocation13 + $0x38] sm:$0xf]
    %v771 = vld [vmem:[#allocation13 + $0x3c] sm:$0xf]
    %v772 = vld [vmem:[%s12] sm:$0x1]
    %v774 = vperm.slane %v772, 0
    %v792 = vunpack.c.l.b16 %v756
    %v793 = vunpack.c.l.b16 %v757
    %v794 = vunpack.c.l.b16 %v758
    %v795 = vunpack.c.l.b16 %v759
    %v796 = vunpack.c.l.b16 %v760
    %v797 = vunpack.c.l.b16 %v761
    %v798 = vunpack.c.l.b16 %v762
    %v799 = vunpack.c.l.b16 %v763
    %v800 = vunpack.c.l.b16 %v764
    %v801 = vunpack.c.l.b16 %v765
    %v802 = vunpack.c.l.b16 %v766
    %v803 = vunpack.c.l.b16 %v767
    %v804 = vunpack.c.l.b16 %v768
    %v805 = vunpack.c.l.b16 %v769
    %v806 = vunpack.c.l.b16 %v770
    %v807 = vunpack.c.l.b16 %v771
    %v808 = vpack.c.b16 %v793, %v792
    %v809 = vpack.c.b16 %v795, %v794
    %v810 = vpack.c.b16 %v797, %v796
    %v811 = vpack.c.b16 %v799, %v798
    %v812 = vpack.c.b16 %v801, %v800
    %v813 = vpack.c.b16 %v803, %v802
    %v814 = vpack.c.b16 %v805, %v804
    %v815 = vpack.c.b16 %v807, %v806
    %824 = vmatpush.bf16.msra.mxu0 %v815
    %825 = vmatpush.bf16.msra.mxu0 %v814
    %826 = vmatpush.bf16.msra.mxu0 %v813
    %827 = vmatpush.bf16.msra.mxu0 %v812
    %828 = vmatpush.bf16.msra.mxu0 %v811
    %829 = vmatpush.bf16.msra.mxu0 %v810
    %830 = vmatpush.bf16.msra.mxu0 %v809
    %831 = vmatpush.bf16.msra.mxu0 %v808
    %832 = vmatmul.bf16.gmra.mxu0 %v755
    %v833 = vpop.f32.mrf.mxu0
    %v834 = vadd.f32 %v774, %v833
    %v835 = vpop.f32.mrf.mxu0
    %v836 = vadd.f32 %v774, %v835
    %837 = vdwg.mxu0
    %838 = vst [vmem:[#allocation14] sm:$0xff] %v834
    %839 = vst [vmem:[#allocation14 + $0x8] sm:$0xff] %v836
    // Predicated region
    $region82: #{tpu_custom_call.1} parent=1 // pred_check
      _
    $region83: #{tpu_custom_call.1} parent=1 // pred_check_branch
      %841 = sbr.rel (0) target = $region85
    $region84: #{tpu_custom_call.1} parent=1 // pred_region
      %843 = vsyncadd [#allocation4], 0
      %s844 = sshll.u32 [#allocation14], 4
      %s845 = int_to_ptr.vmem [resolvable:$true] %s844
      %s846 = sshll.u32 %s13, 4
      %s847 = int_to_ptr.hbm [resolvable:$true] %s846
      %852 = dma.vmem_to_hbm [thread:$0]  %s845, 256, %s847, [#allocation4], 128, 128, 8
    $region85: #{tpu_custom_call.1} parent=1 // pred_fallthru
      _
    // Predicated region
    $region86: #{tpu_custom_call.1} parent=1 // pred_check
      _
    $region87: #{tpu_custom_call.1} parent=1 // pred_check_branch
      %854 = sbr.rel (0) target = $region89
    $region88: #{tpu_custom_call.1} parent=1 // pred_region
      %856 = dma.done [#allocation4], 256
    $region89: #{tpu_custom_call.1} parent=1 // pred_fallthru
      _
    %857 = vsyncpa [#allocation3], 1
    %858 = vsyncpa [#allocation6], 1
    %859 = vsyncpa [#allocation9], 1
    %860 = vsyncpa [#allocation12], 1
    %861 = vsyncpa [#allocation4], 1

</llo_original>
